<compile_context>
chip_gen: v6e
topology: v6e:2x2x1
jax: 0.10.0
libtpu: 0.0.40
codegen_flags: <defaults>
</compile_context>

<pallas_src>
import functools

import jax
import jax.numpy as jnp
from jax import lax
from jax.experimental import pallas as pl
from jax.experimental.pallas import tpu as pltpu

_LANES = 128


def _round_up(x, m):
    return ((x + m - 1) // m) * m


def _pick_tile_rows(num_rows, row_width, elem_bytes, per_buffer_budget=4 * 1024 * 1024):
    """Largest 8-aligned divisor of num_rows whose (rows, row_width) tile fits
    the per-buffer budget (~4 MiB => 2 heatmap inputs x 2 buffers = 16 MiB,
    comfortably inside v7x's 64 MiB VMEM)."""
    if num_rows % 8 != 0:
        return num_rows                      # single full block (still legal)
    best = 8
    r = 8
    while r <= num_rows:
        if num_rows % r == 0 and r * row_width * elem_bytes <= per_buffer_budget:
            best = r
        r += 8
    return best


# -----------------------------------------------------------------------------
# Fused kernel: focal partials per heatmap tile + RegL1 (wh & reg) at last step.
# -----------------------------------------------------------------------------
def _det_loss_kernel(hm_ref, gt_ref, wh_ref, reg_ref,
                     indr_ref, indl_ref, mask_ref, whtgt_ref, regtgt_ref,
                     out_ref):
    i = pl.program_id(0)

    # ---------------- focal-loss partials for this (tile_rows, HW) tile -------
    x = hm_ref[...].astype(jnp.float32)
    g = gt_ref[...].astype(jnp.float32)

    # output['hm'] = clamp(sigmoid(output['hm']), 1e-4, 1 - 1e-4)
    pred = jnp.clip(jax.nn.sigmoid(x), 0.0001, 1.0 - 0.0001)

    pos_inds = (g == 1.0).astype(jnp.float32)     # peaks are exactly 1.0 (also in bf16)
    neg_inds = 1.0 - pos_inds
    neg_weights = (1.0 - g) ** 4

    pos_loss = jnp.log(pred) * (1.0 - pred) ** 2 * pos_inds
    neg_loss = jnp.log(1.0 - pred) * pred * pred * neg_weights * neg_inds

    num_pos = jnp.sum(pos_inds)
    pos_sum = jnp.sum(pos_loss)
    neg_sum = jnp.sum(neg_loss)

    lane = lax.broadcasted_iota(jnp.int32, (8, _LANES), 1)
    sub = lax.broadcasted_iota(jnp.int32, (8, _LANES), 0)
    row0 = sub == 0
    tile = jnp.where(row0 & (lane == 0), num_pos, 0.0)
    tile = jnp.where(row0 & (lane == 1), pos_sum, tile)
    tile = jnp.where(row0 & (lane == 2), neg_sum, tile)
    out_ref[0] = tile

    # ---------------- RegL1 (both heads), computed once -----------------------
    @pl.when(i == pl.num_programs(0) - 1)
    def _():
        K, B = indr_ref.shape
        Cw = whtgt_ref.shape[1] // B
        Cr = regtgt_ref.shape[1] // B
        R = wh_ref.shape[1]                     # HW // 128 chunks (sublane axis)
        L = wh_ref.shape[2]                     # 128 lanes

        r_iota = lax.broadcasted_iota(jnp.int32, (K, R), 1)
        l_iota = lax.broadcasted_iota(jnp.int32, (K, L), 1)

        wh_num = jnp.float32(0.0)
        off_num = jnp.float32(0.0)
        for b in range(B):
            # Chunk / lane selectors built once per batch element and shared by
            # both regression heads and all channels (tiny: K x (R + 128) f32).
            oh_r = (r_iota == indr_ref[:, b:b + 1]).astype(jnp.float32)   # (K, R)
            oh_l = (l_iota == indl_ref[:, b:b + 1]).astype(jnp.float32)   # (K, L)
            m = mask_ref[:, b:b + 1].astype(jnp.float32)                  # (K, 1)

            for c in range(Cw):
                chunk = jnp.dot(oh_r, wh_ref[b * Cw + c].astype(jnp.float32),
                                preferred_element_type=jnp.float32)       # (K, L)
                p = jnp.sum(chunk * oh_l, axis=1, keepdims=True)          # (K, 1)
                t = whtgt_ref[:, b * Cw + c:b * Cw + c + 1].astype(jnp.float32)
                wh_num = wh_num + jnp.sum(jnp.abs(p * m - t * m))

            for c in range(Cr):
                chunk = jnp.dot(oh_r, reg_ref[b * Cr + c].astype(jnp.float32),
                                preferred_element_type=jnp.float32)       # (K, L)
                p = jnp.sum(chunk * oh_l, axis=1, keepdims=True)          # (K, 1)
                t = regtgt_ref[:, b * Cr + c:b * Cr + c + 1].astype(jnp.float32)
                off_num = off_num + jnp.sum(jnp.abs(p * m - t * m))

        mask_sum = jnp.sum(mask_ref[...].astype(jnp.float32))

        lane2 = lax.broadcasted_iota(jnp.int32, (8, _LANES), 1)
        sub2 = lax.broadcasted_iota(jnp.int32, (8, _LANES), 0)
        r0 = sub2 == 0
        extra = jnp.where(r0 & (lane2 == 3), wh_num, 0.0)
        extra = jnp.where(r0 & (lane2 == 4), off_num, extra)
        extra = jnp.where(r0 & (lane2 == 5), mask_sum, extra)
        out_ref[0] = out_ref[0] + extra


# -----------------------------------------------------------------------------
# Wrapper: one fused pallas_call, partial reduction + finalization in JAX.
# -----------------------------------------------------------------------------
@functools.partial(jax.jit, static_argnames=("tile_rows",))
def det_loss_pallas(hm_logits, gt_hm, wh_pred, reg_pred, reg_mask, ind,
                    wh_target, reg_target, *, tile_rows=None):
    """Returns (hm_loss, wh_loss, off_loss)."""
    B, Chm, H, W = hm_logits.shape
    HW = H * W
    BC = B * Chm
    Cw = wh_pred.shape[1]
    Cr = reg_pred.shape[1]
    K = ind.shape[1]

    if HW % _LANES != 0:
        # TODO(synk): pad the flattened spatial axis to a 128 multiple for odd maps.
        raise ValueError(f"H*W={HW} must be a multiple of {_LANES}")
    R = HW // _LANES

    # Heatmaps lane-dense (B*C, H*W); regression maps are only *reshaped* (no HBM
    # transpose) to (B*C, HW/128, 128) so the gather index splits into a chunk
    # (sublane) index and a lane index.
    hm2 = hm_logits.reshape(BC, HW)
    gt2 = gt_hm.reshape(BC, HW)
    wh3 = wh_pred.reshape(B * Cw, R, _LANES)
    reg3 = reg_pred.reshape(B * Cr, R, _LANES)

    ind = ind.astype(jnp.int32)
    ind_r = jnp.transpose(ind // _LANES, (1, 0))                   # (K, B)
    ind_l = jnp.transpose(ind % _LANES, (1, 0))                    # (K, B)
    mask_t = jnp.transpose(reg_mask.astype(jnp.float32), (1, 0))   # (K, B)
    wh_t = jnp.transpose(wh_target.astype(jnp.float32), (1, 0, 2)).reshape(K, B * Cw)
    reg_t = jnp.transpose(reg_target.astype(jnp.float32), (1, 0, 2)).reshape(K, B * Cr)

    hm_bytes = jnp.dtype(hm2.dtype).itemsize
    if tile_rows is None:
        tile_rows = _pick_tile_rows(BC, HW, hm_bytes)
    assert BC % tile_rows == 0 and (tile_rows % 8 == 0 or tile_rows == BC), (
        f"tile_rows={tile_rows} must divide B*C={BC} and be 8-aligned")
    grid = (BC // tile_rows,)

    # VMEM budget: 2 heatmap inputs x 2 pipeline buffers x tile + resident
    # regression maps (x2 buffers, sublane-padded) + slack for small operands.
    tile_bytes = _round_up(tile_rows, 8) * HW * hm_bytes
    feat_bytes = ((B * Cw + B * Cr) * _round_up(R, 8) * _LANES
                  * jnp.dtype(wh3.dtype).itemsize)
    vmem_limit = int(min(4 * tile_bytes + 2 * feat_bytes + (2 << 20),
                         112 * 1024 * 1024))

    cost = pl.CostEstimate(
        flops=int(12 * BC * HW + 2 * B * (Cw + Cr) * K * R * _LANES),
        transcendentals=int(3 * BC * HW),
        bytes_accessed=int((2 * BC * HW + B * (Cw + Cr) * HW) * hm_bytes
                           + grid[0] * 8 * _LANES * 4),
    )

    partials = pl.pallas_call(
        _det_loss_kernel,
        out_shape=jax.ShapeDtypeStruct((grid[0], 8, _LANES), jnp.float32),
        grid_spec=pltpu.PrefetchScalarGridSpec(
            num_scalar_prefetch=0,
            grid=grid,
            in_specs=[
                pl.BlockSpec((tile_rows, HW), lambda i: (i, 0)),          # hm logits
                pl.BlockSpec((tile_rows, HW), lambda i: (i, 0)),          # gt heatmap
                pl.BlockSpec((B * Cw, R, _LANES), lambda i: (0, 0, 0)),   # wh feat (resident)
                pl.BlockSpec((B * Cr, R, _LANES), lambda i: (0, 0, 0)),   # reg feat (resident)
                pl.BlockSpec((K, B), lambda i: (0, 0)),                   # ind // 128
                pl.BlockSpec((K, B), lambda i: (0, 0)),                   # ind % 128
                pl.BlockSpec((K, B), lambda i: (0, 0)),                   # reg_mask
                pl.BlockSpec((K, B * Cw), lambda i: (0, 0)),              # wh target
                pl.BlockSpec((K, B * Cr), lambda i: (0, 0)),              # reg target
            ],
            out_specs=pl.BlockSpec((1, 8, _LANES), lambda i: (i, 0, 0)),
        ),
        compiler_params=pltpu.CompilerParams(
            dimension_semantics=("parallel",),
            vmem_limit_bytes=vmem_limit,
        ),
        cost_estimate=cost,
    )(hm2, gt2, wh3, reg3, ind_r, ind_l, mask_t, wh_t, reg_t)

    # Finalize the three losses from the per-block partial sums.
    sums = jnp.sum(partials[:, 0, :8], axis=0)
    num_pos, pos_sum, neg_sum = sums[0], sums[1], sums[2]
    wh_num, off_num, mask_sum = sums[3], sums[4], sums[5]

    hm_loss = jnp.where(num_pos == 0.0, -neg_sum,
                        -(pos_sum + neg_sum) / jnp.maximum(num_pos, 1.0))
    wh_loss = wh_num / (mask_sum * Cw + 1e-4)
    off_loss = off_num / (mask_sum * Cr + 1e-4)
    return hm_loss, wh_loss, off_loss


# -----------------------------------------------------------------------------
# DetLoss.forward
# -----------------------------------------------------------------------------
def det_loss_forward(output, batch, *, tile_rows=None):
    out0 = output[0]
    hm_loss, wh_loss, off_loss = det_loss_pallas(
        out0['hm'], batch['hm'], out0['wh'], out0['reg'],
        batch['reg_mask'], batch['ind'], batch['wh'], batch['reg'],
        tile_rows=tile_rows)
    loss = hm_loss + 0.1 * wh_loss + 1.0 * off_loss
    loss_list = {'loss': loss, 'hm_loss': hm_loss, 'wh_loss': wh_loss,
                 'off_loss': off_loss}
    return loss, loss_list


# -----------------------------------------------------------------------------
# Pure-JAX reference (correctness check only)
# -----------------------------------------------------------------------------
def _ref_focal(logits, gt):
    pred = jnp.clip(jax.nn.sigmoid(logits), 0.0001, 1.0 - 0.0001)
    pos = (gt == 1.0).astype(jnp.float32)
    neg = 1.0 - pos
    nw = (1.0 - gt) ** 4
    pl_ = jnp.log(pred) * (1.0 - pred) ** 2 * pos
    nl_ = jnp.log(1.0 - pred) * pred ** 2 * nw * neg
    npos = jnp.sum(pos)
    return jnp.where(npos == 0.0, -jnp.sum(nl_),
                     -(jnp.sum(pl_) + jnp.sum(nl_)) / jnp.maximum(npos, 1.0))


def _ref_regl1(feat_nchw, mask, ind, tgt):
    B, C, H, W = feat_nchw.shape
    feat = jnp.transpose(feat_nchw, (0, 2, 3, 1)).reshape(B, H * W, C)
    pred = jnp.take_along_axis(feat, ind[:, :, None].astype(jnp.int32), axis=1)
    m = mask[:, :, None].astype(jnp.float32)
    num = jnp.sum(jnp.abs(pred * m - tgt * m))
    den = jnp.sum(m * jnp.ones((1, 1, C), jnp.float32))
    return num / (den + 1e-4)


if __name__ == "__main__":
    key = jax.random.PRNGKey(0)
    B, C_hm, H, W, K = 2, 8, 16, 16, 8
    ks = jax.random.split(key, 8)

    hm_logit = jax.random.normal(ks[0], (B, C_hm, H, W), jnp.float32)
    wh_pred = jax.random.normal(ks[1], (B, 2, H, W), jnp.float32)
    reg_pred = jax.random.normal(ks[2], (B, 2, H, W), jnp.float32)

    gt_hm = jax.random.uniform(ks[3], (B, C_hm, H, W), jnp.float32, 0.0, 0.95)
    gt_hm = gt_hm.at[:, :, ::7, ::5].set(1.0)      # exact peaks (gt == 1)

    ind = jax.random.randint(ks[4], (B, K), 0, H * W, jnp.int32)
    reg_mask = (jax.random.uniform(ks[5], (B, K)) > 0.3).astype(jnp.float32)
    wh_tgt = jax.random.uniform(ks[6], (B, K, 2), jnp.float32, 0.0, 8.0)
    reg_tgt = jax.random.uniform(ks[7], (B, K, 2), jnp.float32, 0.0, 1.0)

    output = [{'hm': hm_logit, 'wh': wh_pred, 'reg': reg_pred}]
    batch = {'hm': gt_hm, 'reg_mask': reg_mask, 'ind': ind,
             'wh': wh_tgt, 'reg': reg_tgt}

    # tile_rows=8 forces a 2-block grid at this small shape so the tiled
    # partial-sum accumulation and the last-step RegL1 path are both exercised.
    loss, loss_list = det_loss_forward(output, batch, tile_rows=8)
    jax.block_until_ready(loss)

    # reference check
    ref_hm = _ref_focal(hm_logit, gt_hm)
    ref_wh = _ref_regl1(wh_pred, reg_mask, ind, wh_tgt)
    ref_off = _ref_regl1(reg_pred, reg_mask, ind, reg_tgt)
    ref_loss = ref_hm + 0.1 * ref_wh + 1.0 * ref_off
    assert jnp.allclose(loss_list['hm_loss'], ref_hm, rtol=1e-3, atol=1e-3)
    assert jnp.allclose(loss_list['wh_loss'], ref_wh, rtol=1e-3, atol=1e-3)
    assert jnp.allclose(loss_list['off_loss'], ref_off, rtol=1e-3, atol=1e-3)
    assert jnp.allclose(loss, ref_loss, rtol=1e-3, atol=1e-3)

    print("KERNEL_OK")
</pallas_src>

<mosaic_0001>
module attributes {stable_mosaic.version = 11 : i64} {
  func.func @_det_loss_kernel(%arg0: i32, %arg1: memref<8x256xf32, #tpu.memory_space<vmem>>, %arg2: memref<8x256xf32, #tpu.memory_space<vmem>>, %arg3: memref<4x2x128xf32, #tpu.memory_space<vmem>>, %arg4: memref<4x2x128xf32, #tpu.memory_space<vmem>>, %arg5: memref<8x2xi32, #tpu.memory_space<vmem>>, %arg6: memref<8x2xi32, #tpu.memory_space<vmem>>, %arg7: memref<8x2xf32, #tpu.memory_space<vmem>>, %arg8: memref<8x4xf32, #tpu.memory_space<vmem>>, %arg9: memref<8x4xf32, #tpu.memory_space<vmem>>, %arg10: memref<1x8x128xf32, #tpu.memory_space<vmem>>) attributes {dimension_semantics = [#tpu.dimension_semantics<parallel>], iteration_bounds = array<i64: 2>, scalar_prefetch = 0 : i64, scratch_operands = 0 : i64, tpu.core_type = #tpu.core_type<tc>, window_params = [{transform_indices = @transform_0, window_bounds = array<i64: 8, 256>}, {transform_indices = @transform_1, window_bounds = array<i64: 8, 256>}, {pipeline_mode = #tpu.pipeline_mode<synchronous>, transform_indices = @transform_2, window_bounds = array<i64: 4, 2, 128>}, {pipeline_mode = #tpu.pipeline_mode<synchronous>, transform_indices = @transform_3, window_bounds = array<i64: 4, 2, 128>}, {pipeline_mode = #tpu.pipeline_mode<synchronous>, transform_indices = @transform_4, window_bounds = array<i64: 8, 2>}, {pipeline_mode = #tpu.pipeline_mode<synchronous>, transform_indices = @transform_5, window_bounds = array<i64: 8, 2>}, {pipeline_mode = #tpu.pipeline_mode<synchronous>, transform_indices = @transform_6, window_bounds = array<i64: 8, 2>}, {pipeline_mode = #tpu.pipeline_mode<synchronous>, transform_indices = @transform_7, window_bounds = array<i64: 8, 4>}, {pipeline_mode = #tpu.pipeline_mode<synchronous>, transform_indices = @transform_8, window_bounds = array<i64: 8, 4>}, {transform_indices = @transform_9, window_bounds = array<i64: 1, 8, 128>}]} {
    %c0 = arith.constant 0 : index
    %c0_0 = arith.constant 0 : index
    %0 = vector.load %arg1[%c0, %c0_0] : memref<8x256xf32, #tpu.memory_space<vmem>>, vector<8x256xf32>
    %c0_1 = arith.constant 0 : index
    %c0_2 = arith.constant 0 : index
    %1 = vector.load %arg2[%c0_1, %c0_2] : memref<8x256xf32, #tpu.memory_space<vmem>>, vector<8x256xf32>
    %2 = arith.negf %0 : vector<8x256xf32>
    %3 = math.exp %2 : vector<8x256xf32>
    %cst = arith.constant 1.000000e+00 : f32
    %4 = vector.broadcast %cst : f32 to vector<8x256xf32>
    %5 = arith.addf %4, %3 : vector<8x256xf32>
    %6 = arith.divf %4, %5 : vector<8x256xf32>
    %cst_3 = arith.constant 9.99999974E-5 : f32
    %cst_4 = arith.constant 0.999899983 : f32
    %7 = vector.broadcast %cst_3 : f32 to vector<8x256xf32>
    %8 = arith.maximumf %7, %6 : vector<8x256xf32>
    %9 = vector.broadcast %cst_4 : f32 to vector<8x256xf32>
    %10 = arith.minimumf %9, %8 : vector<8x256xf32>
    %cst_5 = arith.constant 1.000000e+00 : f32
    %11 = vector.broadcast %cst_5 : f32 to vector<8x256xf32>
    %12 = arith.cmpf oeq, %1, %11 : vector<8x256xf32>
    %13 = arith.extui %12 : vector<8x256xi1> to vector<8x256xi32>
    %14 = arith.sitofp %13 : vector<8x256xi32> to vector<8x256xf32>
    %cst_6 = arith.constant 1.000000e+00 : f32
    %15 = vector.broadcast %cst_6 : f32 to vector<8x256xf32>
    %16 = arith.subf %15, %14 : vector<8x256xf32>
    %cst_7 = arith.constant 1.000000e+00 : f32
    %17 = vector.broadcast %cst_7 : f32 to vector<8x256xf32>
    %18 = arith.subf %17, %1 : vector<8x256xf32>
    %19 = arith.mulf %18, %18 : vector<8x256xf32>
    %20 = arith.mulf %19, %19 : vector<8x256xf32>
    %21 = math.log %10 : vector<8x256xf32>
    %cst_8 = arith.constant 1.000000e+00 : f32
    %22 = vector.broadcast %cst_8 : f32 to vector<8x256xf32>
    %23 = arith.subf %22, %10 : vector<8x256xf32>
    %24 = arith.mulf %23, %23 : vector<8x256xf32>
    %25 = arith.mulf %21, %24 : vector<8x256xf32>
    %26 = arith.mulf %25, %14 : vector<8x256xf32>
    %cst_9 = arith.constant 1.000000e+00 : f32
    %27 = vector.broadcast %cst_9 : f32 to vector<8x256xf32>
    %28 = arith.subf %27, %10 : vector<8x256xf32>
    %29 = math.log %28 : vector<8x256xf32>
    %30 = arith.mulf %29, %10 : vector<8x256xf32>
    %31 = arith.mulf %30, %10 : vector<8x256xf32>
    %32 = arith.mulf %31, %20 : vector<8x256xf32>
    %33 = arith.mulf %32, %16 : vector<8x256xf32>
    %34 = vector.shape_cast %14 : vector<8x256xf32> to vector<1x8x256xf32>
    %cst_10 = arith.constant dense<0.000000e+00> : vector<1xf32>
    %35 = vector.multi_reduction <add>, %34, %cst_10 [1, 2] : vector<1x8x256xf32> to vector<1xf32>
    %36 = vector.shape_cast %35 : vector<1xf32> to vector<1x1x1xf32>
    %37 = vector.extract %36[0, 0, 0] : f32 from vector<1x1x1xf32>
    %38 = vector.shape_cast %26 : vector<8x256xf32> to vector<1x8x256xf32>
    %cst_11 = arith.constant dense<0.000000e+00> : vector<1xf32>
    %39 = vector.multi_reduction <add>, %38, %cst_11 [1, 2] : vector<1x8x256xf32> to vector<1xf32>
    %40 = vector.shape_cast %39 : vector<1xf32> to vector<1x1x1xf32>
    %41 = vector.extract %40[0, 0, 0] : f32 from vector<1x1x1xf32>
    %42 = vector.shape_cast %33 : vector<8x256xf32> to vector<1x8x256xf32>
    %cst_12 = arith.constant dense<0.000000e+00> : vector<1xf32>
    %43 = vector.multi_reduction <add>, %42, %cst_12 [1, 2] : vector<1x8x256xf32> to vector<1xf32>
    %44 = vector.shape_cast %43 : vector<1xf32> to vector<1x1x1xf32>
    %45 = vector.extract %44[0, 0, 0] : f32 from vector<1x1x1xf32>
    %46 = tpu.iota {dimensions = array<i32: 1>} : vector<8x128xi32>
    %47 = tpu.iota {dimensions = array<i32: 0>} : vector<8x128xi32>
    %c0_i32 = arith.constant 0 : i32
    %48 = vector.broadcast %c0_i32 : i32 to vector<8x128xi32>
    %49 = arith.cmpi eq, %47, %48 : vector<8x128xi32>
    %c0_i32_13 = arith.constant 0 : i32
    %50 = vector.broadcast %c0_i32_13 : i32 to vector<8x128xi32>
    %51 = arith.cmpi eq, %46, %50 : vector<8x128xi32>
    %52 = arith.andi %49, %51 : vector<8x128xi1>
    %cst_14 = arith.constant 0.000000e+00 : f32
    %53 = vector.broadcast %37 : f32 to vector<8x128xf32>
    %54 = vector.broadcast %cst_14 : f32 to vector<8x128xf32>
    %55 = arith.select %52, %53, %54 : vector<8x128xi1>, vector<8x128xf32>
    %c1_i32 = arith.constant 1 : i32
    %56 = vector.broadcast %c1_i32 : i32 to vector<8x128xi32>
    %57 = arith.cmpi eq, %46, %56 : vector<8x128xi32>
    %58 = arith.andi %49, %57 : vector<8x128xi1>
    %59 = vector.broadcast %41 : f32 to vector<8x128xf32>
    %60 = arith.select %58, %59, %55 : vector<8x128xi1>, vector<8x128xf32>
    %c2_i32 = arith.constant 2 : i32
    %61 = vector.broadcast %c2_i32 : i32 to vector<8x128xi32>
    %62 = arith.cmpi eq, %46, %61 : vector<8x128xi32>
    %63 = arith.andi %49, %62 : vector<8x128xi1>
    %64 = vector.broadcast %45 : f32 to vector<8x128xf32>
    %65 = arith.select %63, %64, %60 : vector<8x128xi1>, vector<8x128xf32>
    %c0_15 = arith.constant 0 : index
    %c0_16 = arith.constant 0 : index
    %c0_17 = arith.constant 0 : index
    %66 = vector.load %arg10[%c0_15, %c0_16, %c0_17] : memref<1x8x128xf32, #tpu.memory_space<vmem>>, vector<1x8x128xf32>
    %67 = vector.shape_cast %66 : vector<1x8x128xf32> to vector<8x128xf32>
    %68 = vector.shape_cast %65 : vector<8x128xf32> to vector<1x8x128xf32>
    tpu.vector_store %arg10[%c0_15, %c0_16, %c0_17], %68 {strides = array<i32>} : memref<1x8x128xf32, #tpu.memory_space<vmem>>, vector<1x8x128xf32>,
    %c1_i32_18 = arith.constant 1 : i32
    %69 = arith.cmpi eq, %arg0, %c1_i32_18 : i32
    %70 = arith.extui %69 : i1 to i32
    %c0_i32_19 = arith.constant 0 : i32
    %71 = arith.cmpi ne, %70, %c0_i32_19 : i32
    scf.if %71 {
      %72 = tpu.iota {dimensions = array<i32: 1>} : vector<8x2xi32>
      %73 = tpu.iota {dimensions = array<i32: 1>} : vector<8x128xi32>
      %c0_20 = arith.constant 0 : index
      %c0_21 = arith.constant 0 : index
      %74 = vector.load %arg5[%c0_20, %c0_21] : memref<8x2xi32, #tpu.memory_space<vmem>>, vector<8x1xi32>
      %75 = vector.broadcast %74 : vector<8x1xi32> to vector<8x2xi32>
      %76 = arith.cmpi eq, %72, %75 : vector<8x2xi32>
      %77 = arith.extui %76 : vector<8x2xi1> to vector<8x2xi32>
      %78 = arith.sitofp %77 : vector<8x2xi32> to vector<8x2xf32>
      %c0_22 = arith.constant 0 : index
      %c0_23 = arith.constant 0 : index
      %79 = vector.load %arg6[%c0_22, %c0_23] : memref<8x2xi32, #tpu.memory_space<vmem>>, vector<8x1xi32>
      %80 = vector.broadcast %79 : vector<8x1xi32> to vector<8x128xi32>
      %81 = arith.cmpi eq, %73, %80 : vector<8x128xi32>
      %82 = arith.extui %81 : vector<8x128xi1> to vector<8x128xi32>
      %83 = arith.sitofp %82 : vector<8x128xi32> to vector<8x128xf32>
      %c0_24 = arith.constant 0 : index
      %c0_25 = arith.constant 0 : index
      %84 = vector.load %arg7[%c0_24, %c0_25] : memref<8x2xf32, #tpu.memory_space<vmem>>, vector<8x1xf32>
      %c0_26 = arith.constant 0 : index
      %c0_27 = arith.constant 0 : index
      %c0_28 = arith.constant 0 : index
      %85 = vector.load %arg3[%c0_26, %c0_27, %c0_28] : memref<4x2x128xf32, #tpu.memory_space<vmem>>, vector<1x2x128xf32>
      %86 = vector.shape_cast %85 : vector<1x2x128xf32> to vector<2x128xf32>
      %cst_29 = arith.constant dense<0.000000e+00> : vector<8x128xf32>
      %87 = tpu.matmul %78, %86, %cst_29 {dimension_numbers = #tpu.dot_dimension_numbers<[1], [0], [0], [1], [0, 0, 1, 1], [], []>} : vector<8x2xf32>, vector<2x128xf32>, vector<8x128xf32> -> vector<8x128xf32>
      %88 = arith.mulf %87, %83 : vector<8x128xf32>
      %cst_30 = arith.constant dense<0.000000e+00> : vector<8xf32>
      %89 = vector.multi_reduction <add>, %88, %cst_30 [1] : vector<8x128xf32> to vector<8xf32>
      %90 = vector.shape_cast %89 : vector<8xf32> to vector<8x1xf32>
      %c0_31 = arith.constant 0 : index
      %c0_32 = arith.constant 0 : index
      %91 = vector.load %arg8[%c0_31, %c0_32] : memref<8x4xf32, #tpu.memory_space<vmem>>, vector<8x1xf32>
      %92 = arith.mulf %90, %84 : vector<8x1xf32>
      %93 = arith.mulf %91, %84 : vector<8x1xf32>
      %94 = arith.subf %92, %93 : vector<8x1xf32>
      %95 = math.absf %94 : vector<8x1xf32>
      %96 = vector.shape_cast %95 : vector<8x1xf32> to vector<1x8x1xf32>
      %cst_33 = arith.constant dense<0.000000e+00> : vector<1xf32>
      %97 = vector.multi_reduction <add>, %96, %cst_33 [1, 2] : vector<1x8x1xf32> to vector<1xf32>
      %98 = vector.shape_cast %97 : vector<1xf32> to vector<1x1x1xf32>
      %99 = vector.extract %98[0, 0, 0] : f32 from vector<1x1x1xf32>
      %cst_34 = arith.constant 0.000000e+00 : f32
      %100 = arith.addf %cst_34, %99 : f32
      %c1 = arith.constant 1 : index
      %c0_35 = arith.constant 0 : index
      %c0_36 = arith.constant 0 : index
      %101 = vector.load %arg3[%c1, %c0_35, %c0_36] : memref<4x2x128xf32, #tpu.memory_space<vmem>>, vector<1x2x128xf32>
      %102 = vector.shape_cast %101 : vector<1x2x128xf32> to vector<2x128xf32>
      %cst_37 = arith.constant dense<0.000000e+00> : vector<8x128xf32>
      %103 = tpu.matmul %78, %102, %cst_37 {dimension_numbers = #tpu.dot_dimension_numbers<[1], [0], [0], [1], [0, 0, 1, 1], [], []>} : vector<8x2xf32>, vector<2x128xf32>, vector<8x128xf32> -> vector<8x128xf32>
      %104 = arith.mulf %103, %83 : vector<8x128xf32>
      %cst_38 = arith.constant dense<0.000000e+00> : vector<8xf32>
      %105 = vector.multi_reduction <add>, %104, %cst_38 [1] : vector<8x128xf32> to vector<8xf32>
      %106 = vector.shape_cast %105 : vector<8xf32> to vector<8x1xf32>
      %c0_39 = arith.constant 0 : index
      %c1_40 = arith.constant 1 : index
      %107 = vector.load %arg8[%c0_39, %c1_40] : memref<8x4xf32, #tpu.memory_space<vmem>>, vector<8x1xf32>
      %108 = arith.mulf %106, %84 : vector<8x1xf32>
      %109 = arith.mulf %107, %84 : vector<8x1xf32>
      %110 = arith.subf %108, %109 : vector<8x1xf32>
      %111 = math.absf %110 : vector<8x1xf32>
      %112 = vector.shape_cast %111 : vector<8x1xf32> to vector<1x8x1xf32>
      %cst_41 = arith.constant dense<0.000000e+00> : vector<1xf32>
      %113 = vector.multi_reduction <add>, %112, %cst_41 [1, 2] : vector<1x8x1xf32> to vector<1xf32>
      %114 = vector.shape_cast %113 : vector<1xf32> to vector<1x1x1xf32>
      %115 = vector.extract %114[0, 0, 0] : f32 from vector<1x1x1xf32>
      %116 = arith.addf %100, %115 : f32
      %c0_42 = arith.constant 0 : index
      %c0_43 = arith.constant 0 : index
      %c0_44 = arith.constant 0 : index
      %117 = vector.load %arg4[%c0_42, %c0_43, %c0_44] : memref<4x2x128xf32, #tpu.memory_space<vmem>>, vector<1x2x128xf32>
      %118 = vector.shape_cast %117 : vector<1x2x128xf32> to vector<2x128xf32>
      %cst_45 = arith.constant dense<0.000000e+00> : vector<8x128xf32>
      %119 = tpu.matmul %78, %118, %cst_45 {dimension_numbers = #tpu.dot_dimension_numbers<[1], [0], [0], [1], [0, 0, 1, 1], [], []>} : vector<8x2xf32>, vector<2x128xf32>, vector<8x128xf32> -> vector<8x128xf32>
      %120 = arith.mulf %119, %83 : vector<8x128xf32>
      %cst_46 = arith.constant dense<0.000000e+00> : vector<8xf32>
      %121 = vector.multi_reduction <add>, %120, %cst_46 [1] : vector<8x128xf32> to vector<8xf32>
      %122 = vector.shape_cast %121 : vector<8xf32> to vector<8x1xf32>
      %c0_47 = arith.constant 0 : index
      %c0_48 = arith.constant 0 : index
      %123 = vector.load %arg9[%c0_47, %c0_48] : memref<8x4xf32, #tpu.memory_space<vmem>>, vector<8x1xf32>
      %124 = arith.mulf %122, %84 : vector<8x1xf32>
      %125 = arith.mulf %123, %84 : vector<8x1xf32>
      %126 = arith.subf %124, %125 : vector<8x1xf32>
      %127 = math.absf %126 : vector<8x1xf32>
      %128 = vector.shape_cast %127 : vector<8x1xf32> to vector<1x8x1xf32>
      %cst_49 = arith.constant dense<0.000000e+00> : vector<1xf32>
      %129 = vector.multi_reduction <add>, %128, %cst_49 [1, 2] : vector<1x8x1xf32> to vector<1xf32>
      %130 = vector.shape_cast %129 : vector<1xf32> to vector<1x1x1xf32>
      %131 = vector.extract %130[0, 0, 0] : f32 from vector<1x1x1xf32>
      %cst_50 = arith.constant 0.000000e+00 : f32
      %132 = arith.addf %cst_50, %131 : f32
      %c1_51 = arith.constant 1 : index
      %c0_52 = arith.constant 0 : index
      %c0_53 = arith.constant 0 : index
      %133 = vector.load %arg4[%c1_51, %c0_52, %c0_53] : memref<4x2x128xf32, #tpu.memory_space<vmem>>, vector<1x2x128xf32>
      %134 = vector.shape_cast %133 : vector<1x2x128xf32> to vector<2x128xf32>
      %cst_54 = arith.constant dense<0.000000e+00> : vector<8x128xf32>
      %135 = tpu.matmul %78, %134, %cst_54 {dimension_numbers = #tpu.dot_dimension_numbers<[1], [0], [0], [1], [0, 0, 1, 1], [], []>} : vector<8x2xf32>, vector<2x128xf32>, vector<8x128xf32> -> vector<8x128xf32>
      %136 = arith.mulf %135, %83 : vector<8x128xf32>
      %cst_55 = arith.constant dense<0.000000e+00> : vector<8xf32>
      %137 = vector.multi_reduction <add>, %136, %cst_55 [1] : vector<8x128xf32> to vector<8xf32>
      %138 = vector.shape_cast %137 : vector<8xf32> to vector<8x1xf32>
      %c0_56 = arith.constant 0 : index
      %c1_57 = arith.constant 1 : index
      %139 = vector.load %arg9[%c0_56, %c1_57] : memref<8x4xf32, #tpu.memory_space<vmem>>, vector<8x1xf32>
      %140 = arith.mulf %138, %84 : vector<8x1xf32>
      %141 = arith.mulf %139, %84 : vector<8x1xf32>
      %142 = arith.subf %140, %141 : vector<8x1xf32>
      %143 = math.absf %142 : vector<8x1xf32>
      %144 = vector.shape_cast %143 : vector<8x1xf32> to vector<1x8x1xf32>
      %cst_58 = arith.constant dense<0.000000e+00> : vector<1xf32>
      %145 = vector.multi_reduction <add>, %144, %cst_58 [1, 2] : vector<1x8x1xf32> to vector<1xf32>
      %146 = vector.shape_cast %145 : vector<1xf32> to vector<1x1x1xf32>
      %147 = vector.extract %146[0, 0, 0] : f32 from vector<1x1x1xf32>
      %148 = arith.addf %132, %147 : f32
      %c0_59 = arith.constant 0 : index
      %c1_60 = arith.constant 1 : index
      %149 = vector.load %arg5[%c0_59, %c1_60] : memref<8x2xi32, #tpu.memory_space<vmem>>, vector<8x1xi32>
      %150 = vector.broadcast %149 : vector<8x1xi32> to vector<8x2xi32>
      %151 = arith.cmpi eq, %72, %150 : vector<8x2xi32>
      %152 = arith.extui %151 : vector<8x2xi1> to vector<8x2xi32>
      %153 = arith.sitofp %152 : vector<8x2xi32> to vector<8x2xf32>
      %c0_61 = arith.constant 0 : index
      %c1_62 = arith.constant 1 : index
      %154 = vector.load %arg6[%c0_61, %c1_62] : memref<8x2xi32, #tpu.memory_space<vmem>>, vector<8x1xi32>
      %155 = vector.broadcast %154 : vector<8x1xi32> to vector<8x128xi32>
      %156 = arith.cmpi eq, %73, %155 : vector<8x128xi32>
      %157 = arith.extui %156 : vector<8x128xi1> to vector<8x128xi32>
      %158 = arith.sitofp %157 : vector<8x128xi32> to vector<8x128xf32>
      %c0_63 = arith.constant 0 : index
      %c1_64 = arith.constant 1 : index
      %159 = vector.load %arg7[%c0_63, %c1_64] : memref<8x2xf32, #tpu.memory_space<vmem>>, vector<8x1xf32>
      %c2 = arith.constant 2 : index
      %c0_65 = arith.constant 0 : index
      %c0_66 = arith.constant 0 : index
      %160 = vector.load %arg3[%c2, %c0_65, %c0_66] : memref<4x2x128xf32, #tpu.memory_space<vmem>>, vector<1x2x128xf32>
      %161 = vector.shape_cast %160 : vector<1x2x128xf32> to vector<2x128xf32>
      %cst_67 = arith.constant dense<0.000000e+00> : vector<8x128xf32>
      %162 = tpu.matmul %153, %161, %cst_67 {dimension_numbers = #tpu.dot_dimension_numbers<[1], [0], [0], [1], [0, 0, 1, 1], [], []>} : vector<8x2xf32>, vector<2x128xf32>, vector<8x128xf32> -> vector<8x128xf32>
      %163 = arith.mulf %162, %158 : vector<8x128xf32>
      %cst_68 = arith.constant dense<0.000000e+00> : vector<8xf32>
      %164 = vector.multi_reduction <add>, %163, %cst_68 [1] : vector<8x128xf32> to vector<8xf32>
      %165 = vector.shape_cast %164 : vector<8xf32> to vector<8x1xf32>
      %c0_69 = arith.constant 0 : index
      %c2_70 = arith.constant 2 : index
      %166 = vector.load %arg8[%c0_69, %c2_70] : memref<8x4xf32, #tpu.memory_space<vmem>>, vector<8x1xf32>
      %167 = arith.mulf %165, %159 : vector<8x1xf32>
      %168 = arith.mulf %166, %159 : vector<8x1xf32>
      %169 = arith.subf %167, %168 : vector<8x1xf32>
      %170 = math.absf %169 : vector<8x1xf32>
      %171 = vector.shape_cast %170 : vector<8x1xf32> to vector<1x8x1xf32>
      %cst_71 = arith.constant dense<0.000000e+00> : vector<1xf32>
      %172 = vector.multi_reduction <add>, %171, %cst_71 [1, 2] : vector<1x8x1xf32> to vector<1xf32>
      %173 = vector.shape_cast %172 : vector<1xf32> to vector<1x1x1xf32>
      %174 = vector.extract %173[0, 0, 0] : f32 from vector<1x1x1xf32>
      %175 = arith.addf %116, %174 : f32
      %c3 = arith.constant 3 : index
      %c0_72 = arith.constant 0 : index
      %c0_73 = arith.constant 0 : index
      %176 = vector.load %arg3[%c3, %c0_72, %c0_73] : memref<4x2x128xf32, #tpu.memory_space<vmem>>, vector<1x2x128xf32>
      %177 = vector.shape_cast %176 : vector<1x2x128xf32> to vector<2x128xf32>
      %cst_74 = arith.constant dense<0.000000e+00> : vector<8x128xf32>
      %178 = tpu.matmul %153, %177, %cst_74 {dimension_numbers = #tpu.dot_dimension_numbers<[1], [0], [0], [1], [0, 0, 1, 1], [], []>} : vector<8x2xf32>, vector<2x128xf32>, vector<8x128xf32> -> vector<8x128xf32>
      %179 = arith.mulf %178, %158 : vector<8x128xf32>
      %cst_75 = arith.constant dense<0.000000e+00> : vector<8xf32>
      %180 = vector.multi_reduction <add>, %179, %cst_75 [1] : vector<8x128xf32> to vector<8xf32>
      %181 = vector.shape_cast %180 : vector<8xf32> to vector<8x1xf32>
      %c0_76 = arith.constant 0 : index
      %c3_77 = arith.constant 3 : index
      %182 = vector.load %arg8[%c0_76, %c3_77] : memref<8x4xf32, #tpu.memory_space<vmem>>, vector<8x1xf32>
      %183 = arith.mulf %181, %159 : vector<8x1xf32>
      %184 = arith.mulf %182, %159 : vector<8x1xf32>
      %185 = arith.subf %183, %184 : vector<8x1xf32>
      %186 = math.absf %185 : vector<8x1xf32>
      %187 = vector.shape_cast %186 : vector<8x1xf32> to vector<1x8x1xf32>
      %cst_78 = arith.constant dense<0.000000e+00> : vector<1xf32>
      %188 = vector.multi_reduction <add>, %187, %cst_78 [1, 2] : vector<1x8x1xf32> to vector<1xf32>
      %189 = vector.shape_cast %188 : vector<1xf32> to vector<1x1x1xf32>
      %190 = vector.extract %189[0, 0, 0] : f32 from vector<1x1x1xf32>
      %191 = arith.addf %175, %190 : f32
      %c2_79 = arith.constant 2 : index
      %c0_80 = arith.constant 0 : index
      %c0_81 = arith.constant 0 : index
      %192 = vector.load %arg4[%c2_79, %c0_80, %c0_81] : memref<4x2x128xf32, #tpu.memory_space<vmem>>, vector<1x2x128xf32>
      %193 = vector.shape_cast %192 : vector<1x2x128xf32> to vector<2x128xf32>
      %cst_82 = arith.constant dense<0.000000e+00> : vector<8x128xf32>
      %194 = tpu.matmul %153, %193, %cst_82 {dimension_numbers = #tpu.dot_dimension_numbers<[1], [0], [0], [1], [0, 0, 1, 1], [], []>} : vector<8x2xf32>, vector<2x128xf32>, vector<8x128xf32> -> vector<8x128xf32>
      %195 = arith.mulf %194, %158 : vector<8x128xf32>
      %cst_83 = arith.constant dense<0.000000e+00> : vector<8xf32>
      %196 = vector.multi_reduction <add>, %195, %cst_83 [1] : vector<8x128xf32> to vector<8xf32>
      %197 = vector.shape_cast %196 : vector<8xf32> to vector<8x1xf32>
      %c0_84 = arith.constant 0 : index
      %c2_85 = arith.constant 2 : index
      %198 = vector.load %arg9[%c0_84, %c2_85] : memref<8x4xf32, #tpu.memory_space<vmem>>, vector<8x1xf32>
      %199 = arith.mulf %197, %159 : vector<8x1xf32>
      %200 = arith.mulf %198, %159 : vector<8x1xf32>
      %201 = arith.subf %199, %200 : vector<8x1xf32>
      %202 = math.absf %201 : vector<8x1xf32>
      %203 = vector.shape_cast %202 : vector<8x1xf32> to vector<1x8x1xf32>
      %cst_86 = arith.constant dense<0.000000e+00> : vector<1xf32>
      %204 = vector.multi_reduction <add>, %203, %cst_86 [1, 2] : vector<1x8x1xf32> to vector<1xf32>
      %205 = vector.shape_cast %204 : vector<1xf32> to vector<1x1x1xf32>
      %206 = vector.extract %205[0, 0, 0] : f32 from vector<1x1x1xf32>
      %207 = arith.addf %148, %206 : f32
      %c3_87 = arith.constant 3 : index
      %c0_88 = arith.constant 0 : index
      %c0_89 = arith.constant 0 : index
      %208 = vector.load %arg4[%c3_87, %c0_88, %c0_89] : memref<4x2x128xf32, #tpu.memory_space<vmem>>, vector<1x2x128xf32>
      %209 = vector.shape_cast %208 : vector<1x2x128xf32> to vector<2x128xf32>
      %cst_90 = arith.constant dense<0.000000e+00> : vector<8x128xf32>
      %210 = tpu.matmul %153, %209, %cst_90 {dimension_numbers = #tpu.dot_dimension_numbers<[1], [0], [0], [1], [0, 0, 1, 1], [], []>} : vector<8x2xf32>, vector<2x128xf32>, vector<8x128xf32> -> vector<8x128xf32>
      %211 = arith.mulf %210, %158 : vector<8x128xf32>
      %cst_91 = arith.constant dense<0.000000e+00> : vector<8xf32>
      %212 = vector.multi_reduction <add>, %211, %cst_91 [1] : vector<8x128xf32> to vector<8xf32>
      %213 = vector.shape_cast %212 : vector<8xf32> to vector<8x1xf32>
      %c0_92 = arith.constant 0 : index
      %c3_93 = arith.constant 3 : index
      %214 = vector.load %arg9[%c0_92, %c3_93] : memref<8x4xf32, #tpu.memory_space<vmem>>, vector<8x1xf32>
      %215 = arith.mulf %213, %159 : vector<8x1xf32>
      %216 = arith.mulf %214, %159 : vector<8x1xf32>
      %217 = arith.subf %215, %216 : vector<8x1xf32>
      %218 = math.absf %217 : vector<8x1xf32>
      %219 = vector.shape_cast %218 : vector<8x1xf32> to vector<1x8x1xf32>
      %cst_94 = arith.constant dense<0.000000e+00> : vector<1xf32>
      %220 = vector.multi_reduction <add>, %219, %cst_94 [1, 2] : vector<1x8x1xf32> to vector<1xf32>
      %221 = vector.shape_cast %220 : vector<1xf32> to vector<1x1x1xf32>
      %222 = vector.extract %221[0, 0, 0] : f32 from vector<1x1x1xf32>
      %223 = arith.addf %207, %222 : f32
      %c0_95 = arith.constant 0 : index
      %c0_96 = arith.constant 0 : index
      %224 = vector.load %arg7[%c0_95, %c0_96] : memref<8x2xf32, #tpu.memory_space<vmem>>, vector<8x2xf32>
      %225 = vector.shape_cast %224 : vector<8x2xf32> to vector<1x8x2xf32>
      %cst_97 = arith.constant dense<0.000000e+00> : vector<1xf32>
      %226 = vector.multi_reduction <add>, %225, %cst_97 [1, 2] : vector<1x8x2xf32> to vector<1xf32>
      %227 = vector.shape_cast %226 : vector<1xf32> to vector<1x1x1xf32>
      %228 = vector.extract %227[0, 0, 0] : f32 from vector<1x1x1xf32>
      %229 = tpu.iota {dimensions = array<i32: 1>} : vector<8x128xi32>
      %230 = tpu.iota {dimensions = array<i32: 0>} : vector<8x128xi32>
      %c0_i32_98 = arith.constant 0 : i32
      %231 = vector.broadcast %c0_i32_98 : i32 to vector<8x128xi32>
      %232 = arith.cmpi eq, %230, %231 : vector<8x128xi32>
      %c3_i32 = arith.constant 3 : i32
      %233 = vector.broadcast %c3_i32 : i32 to vector<8x128xi32>
      %234 = arith.cmpi eq, %229, %233 : vector<8x128xi32>
      %235 = arith.andi %232, %234 : vector<8x128xi1>
      %cst_99 = arith.constant 0.000000e+00 : f32
      %236 = vector.broadcast %191 : f32 to vector<8x128xf32>
      %237 = vector.broadcast %cst_99 : f32 to vector<8x128xf32>
      %238 = arith.select %235, %236, %237 : vector<8x128xi1>, vector<8x128xf32>
      %c4_i32 = arith.constant 4 : i32
      %239 = vector.broadcast %c4_i32 : i32 to vector<8x128xi32>
      %240 = arith.cmpi eq, %229, %239 : vector<8x128xi32>
      %241 = arith.andi %232, %240 : vector<8x128xi1>
      %242 = vector.broadcast %223 : f32 to vector<8x128xf32>
      %243 = arith.select %241, %242, %238 : vector<8x128xi1>, vector<8x128xf32>
      %c5_i32 = arith.constant 5 : i32
      %244 = vector.broadcast %c5_i32 : i32 to vector<8x128xi32>
      %245 = arith.cmpi eq, %229, %244 : vector<8x128xi32>
      %246 = arith.andi %232, %245 : vector<8x128xi1>
      %247 = vector.broadcast %228 : f32 to vector<8x128xf32>
      %248 = arith.select %246, %247, %243 : vector<8x128xi1>, vector<8x128xf32>
      %c0_100 = arith.constant 0 : index
      %c0_101 = arith.constant 0 : index
      %c0_102 = arith.constant 0 : index
      %249 = vector.load %arg10[%c0_100, %c0_101, %c0_102] : memref<1x8x128xf32, #tpu.memory_space<vmem>>, vector<1x8x128xf32>
      %250 = vector.shape_cast %249 : vector<1x8x128xf32> to vector<8x128xf32>
      %251 = arith.addf %250, %248 : vector<8x128xf32>
      %c0_103 = arith.constant 0 : index
      %c0_104 = arith.constant 0 : index
      %c0_105 = arith.constant 0 : index
      %252 = vector.load %arg10[%c0_103, %c0_104, %c0_105] : memref<1x8x128xf32, #tpu.memory_space<vmem>>, vector<1x8x128xf32>
      %253 = vector.shape_cast %252 : vector<1x8x128xf32> to vector<8x128xf32>
      %254 = vector.shape_cast %251 : vector<8x128xf32> to vector<1x8x128xf32>
      tpu.vector_store %arg10[%c0_103, %c0_104, %c0_105], %254 {strides = array<i32>} : memref<1x8x128xf32, #tpu.memory_space<vmem>>, vector<1x8x128xf32>,
    } else {
    }
    return
  }
  func.func @transform_0(%arg0: i32) -> (i32, i32) {
    %c0_i32 = arith.constant 0 : i32
    %c0_i32_0 = arith.constant 0 : i32
    return %arg0, %c0_i32 : i32, i32
  }
  func.func @transform_1(%arg0: i32) -> (i32, i32) {
    %c0_i32 = arith.constant 0 : i32
    %c0_i32_0 = arith.constant 0 : i32
    return %arg0, %c0_i32 : i32, i32
  }
  func.func @transform_2(%arg0: i32) -> (i32, i32, i32) {
    %c0_i32 = arith.constant 0 : i32
    %c0_i32_0 = arith.constant 0 : i32
    %c0_i32_1 = arith.constant 0 : i32
    %c0_i32_2 = arith.constant 0 : i32
    return %c0_i32, %c0_i32_0, %c0_i32_1 : i32, i32, i32
  }
  func.func @transform_3(%arg0: i32) -> (i32, i32, i32) {
    %c0_i32 = arith.constant 0 : i32
    %c0_i32_0 = arith.constant 0 : i32
    %c0_i32_1 = arith.constant 0 : i32
    %c0_i32_2 = arith.constant 0 : i32
    return %c0_i32, %c0_i32_0, %c0_i32_1 : i32, i32, i32
  }
  func.func @transform_4(%arg0: i32) -> (i32, i32) {
    %c0_i32 = arith.constant 0 : i32
    %c0_i32_0 = arith.constant 0 : i32
    %c0_i32_1 = arith.constant 0 : i32
    return %c0_i32, %c0_i32_0 : i32, i32
  }
  func.func @transform_5(%arg0: i32) -> (i32, i32) {
    %c0_i32 = arith.constant 0 : i32
    %c0_i32_0 = arith.constant 0 : i32
    %c0_i32_1 = arith.constant 0 : i32
    return %c0_i32, %c0_i32_0 : i32, i32
  }
  func.func @transform_6(%arg0: i32) -> (i32, i32) {
    %c0_i32 = arith.constant 0 : i32
    %c0_i32_0 = arith.constant 0 : i32
    %c0_i32_1 = arith.constant 0 : i32
    return %c0_i32, %c0_i32_0 : i32, i32
  }
  func.func @transform_7(%arg0: i32) -> (i32, i32) {
    %c0_i32 = arith.constant 0 : i32
    %c0_i32_0 = arith.constant 0 : i32
    %c0_i32_1 = arith.constant 0 : i32
    return %c0_i32, %c0_i32_0 : i32, i32
  }
  func.func @transform_8(%arg0: i32) -> (i32, i32) {
    %c0_i32 = arith.constant 0 : i32
    %c0_i32_0 = arith.constant 0 : i32
    %c0_i32_1 = arith.constant 0 : i32
    return %c0_i32, %c0_i32_0 : i32, i32
  }
  func.func @transform_9(%arg0: i32) -> (i32, i32, i32) {
    %c0_i32 = arith.constant 0 : i32
    %c0_i32_0 = arith.constant 0 : i32
    %c0_i32_1 = arith.constant 0 : i32
    return %arg0, %c0_i32, %c0_i32_0 : i32, i32, i32
  }
}

</mosaic_0001>

<llo_original>
// kernel: det_loss_pallas.1
$region0: #{det_loss_pallas.1}
  #allocation0 [shape = 'u32[]', space=smem, size = 0x4, offset = 0x4, fixed_abs, tag = 'smem constant byte address 0x4 - core index']
  #allocation1 [shape = 'u32[144,128]{1,0:T(1,128)}', space=vmem, size = 0x12000, scoped, tag = 'internal scratch']
  %s0 = inlined_call_operand.vmem [shape: f32[16,256], index: 0, kind: input, shape index: {}]
  %s1 = inlined_call_operand.vmem [shape: f32[16,256], index: 1, kind: input, shape index: {}]
  %s2 = inlined_call_operand.vmem [shape: f32[4,2,128], index: 2, kind: input, shape index: {}]
  %s3 = inlined_call_operand.vmem [shape: f32[4,2,128], index: 3, kind: input, shape index: {}]
  %s4 = inlined_call_operand.vmem [shape: s32[8,2], index: 4, kind: input, shape index: {}]
  %s5 = inlined_call_operand.vmem [shape: s32[8,2], index: 5, kind: input, shape index: {}]
  %s6 = inlined_call_operand.vmem [shape: f32[8,2], index: 6, kind: input, shape index: {}]
  %s7 = inlined_call_operand.vmem [shape: f32[8,4], index: 7, kind: input, shape index: {}]
  %s8 = inlined_call_operand.vmem [shape: f32[8,4], index: 8, kind: input, shape index: {}]
  %s9 = inlined_call_operand.vmem [shape: f32[2,8,128], index: 9, kind: output, shape index: {}]
  %s10 = sld [smem:[#allocation0]]
  $region73: #{det_loss_pallas.1} parent=0
    _
  %s12 = ssub.s32 1, %s10
  %s13 = scalar_select 0, %s12, %s10
  loop: start=0, step=1, limit=4
  $region2: #{det_loss_pallas.1} parent=0 // loop_pre_header
    _
  $region3: #{det_loss_pallas.1} parent=0 // loop_header
    %s15 = sphi 0, %s19
    %p16 = scmp.ge.s32.totalorder %s15, 4
    %s25 = sphi 0, %s27
    %s28 = sphi 0, %s25
    %s29 = sphi 0, %s28
    %s45 = sphi 0, %s29
    %s51 = sphi 0, %s53
    %s54 = sphi 0, %s51
    %s55 = sphi 0, %s54
    %s71 = sphi 0, %s55
    %s75 = sphi 0, %s75
    %s77 = sphi 0, %s75
    %s78 = sphi 0, %s77
    %s92 = sphi 0, %s78
    %s96 = sphi 0, %s96
    %s98 = sphi 0, %s96
    %s99 = sphi 0, %s98
    %s113 = sphi 0, %s99
    %s117 = sphi 0, %s117
    %s119 = sphi 0, %s117
    %s120 = sphi 0, %s119
    %s134 = sphi 0, %s120
    %s138 = sphi 0, %s138
    %s140 = sphi 0, %s138
    %s141 = sphi 0, %s140
    %s155 = sphi 0, %s141
    %s159 = sphi 0, %s159
    %s161 = sphi 0, %s159
    %s162 = sphi 0, %s161
    %s176 = sphi 0, %s162
    %s180 = sphi 0, %s180
    %s182 = sphi 0, %s180
    %s183 = sphi 0, %s182
    %s197 = sphi 0, %s183
    %s201 = sphi 0, %s201
    %s203 = sphi 0, %s201
    %s204 = sphi 0, %s203
    %s218 = sphi 0, %s204
    %s224 = sphi 0, %s226
    %s227 = sphi 0, %s224
    %s228 = sphi 0, %s227
    %s244 = sphi 0, %s228
  $region4: #{det_loss_pallas.1} parent=0 // loop_header_branch
    %18 = sbr.rel (%p16) target = $region8
  $region5: #{det_loss_pallas.1} parent=0 // loop_body
    %s20 = ssub.s32 %s15, 1
    %s21 = ssub.s32 %s15, 2
    %s22 = sadd.s32 %s15, 1
    %s23 = ssub.s32 %s15, %s22
    %p24 = scmp.eq.s32.totalorder %s23, 0
    %s26 = sadd.s32 %s25, 1
    %s27 = scalar_select %p24, %s25, %s26
    %p30 = pneg %p24
    %p31 = scmp.eq.s32.totalorder %s15, 1
    %p32 = por %p30, %p31
    %p33 = scmp.ne.s32.totalorder %s25, %s28
    %p34 = scmp.eq.s32.totalorder %s15, 0
    %p35 = por %p33, %p34
    %p36 = scmp.ne.s32.totalorder %s25, %s28
    %p37 = scmp.eq.s32.totalorder %s20, 1
    %p38 = por %p36, %p37
    %p39 = scmp.ne.s32.totalorder %s28, %s29
    %p40 = scmp.eq.s32.totalorder %s20, 0
    %p41 = por %p39, %p40
    %p42 = scmp.ne.s32.totalorder %s28, %s29
    %p43 = scmp.eq.s32.totalorder %s21, 1
    %p44 = por %p42, %p43
    %p46 = scmp.ne.s32.totalorder %s29, %s45
    %p47 = scmp.eq.s32.totalorder %s21, 0
    %p48 = por %p46, %p47
    %s49 = ssub.s32 %s15, %s22
    %p50 = scmp.eq.s32.totalorder %s49, 0
    %s52 = sadd.s32 %s51, 1
    %s53 = scalar_select %p50, %s51, %s52
    %p56 = pneg %p50
    %p57 = scmp.eq.s32.totalorder %s15, 1
    %p58 = por %p56, %p57
    %p59 = scmp.ne.s32.totalorder %s51, %s54
    %p60 = scmp.eq.s32.totalorder %s15, 0
    %p61 = por %p59, %p60
    %p62 = scmp.ne.s32.totalorder %s51, %s54
    %p63 = scmp.eq.s32.totalorder %s20, 1
    %p64 = por %p62, %p63
    %p65 = scmp.ne.s32.totalorder %s54, %s55
    %p66 = scmp.eq.s32.totalorder %s20, 0
    %p67 = por %p65, %p66
    %p68 = scmp.ne.s32.totalorder %s54, %s55
    %p69 = scmp.eq.s32.totalorder %s21, 1
    %p70 = por %p68, %p69
    %p72 = scmp.ne.s32.totalorder %s55, %s71
    %p73 = scmp.eq.s32.totalorder %s21, 0
    %p74 = por %p72, %p73
    %s76 = sadd.s32 %s75, 1
    %p79 = scmp.eq.s32.totalorder %s15, 1
    %p80 = scmp.ne.s32.totalorder %s75, %s77
    %p81 = scmp.eq.s32.totalorder %s15, 0
    %p82 = por %p80, %p81
    %p83 = scmp.ne.s32.totalorder %s75, %s77
    %p84 = scmp.eq.s32.totalorder %s20, 1
    %p85 = por %p83, %p84
    %p86 = scmp.ne.s32.totalorder %s77, %s78
    %p87 = scmp.eq.s32.totalorder %s20, 0
    %p88 = por %p86, %p87
    %p89 = scmp.ne.s32.totalorder %s77, %s78
    %p90 = scmp.eq.s32.totalorder %s21, 1
    %p91 = por %p89, %p90
    %p93 = scmp.ne.s32.totalorder %s78, %s92
    %p94 = scmp.eq.s32.totalorder %s21, 0
    %p95 = por %p93, %p94
    %s97 = sadd.s32 %s96, 1
    %p100 = scmp.eq.s32.totalorder %s15, 1
    %p101 = scmp.ne.s32.totalorder %s96, %s98
    %p102 = scmp.eq.s32.totalorder %s15, 0
    %p103 = por %p101, %p102
    %p104 = scmp.ne.s32.totalorder %s96, %s98
    %p105 = scmp.eq.s32.totalorder %s20, 1
    %p106 = por %p104, %p105
    %p107 = scmp.ne.s32.totalorder %s98, %s99
    %p108 = scmp.eq.s32.totalorder %s20, 0
    %p109 = por %p107, %p108
    %p110 = scmp.ne.s32.totalorder %s98, %s99
    %p111 = scmp.eq.s32.totalorder %s21, 1
    %p112 = por %p110, %p111
    %p114 = scmp.ne.s32.totalorder %s99, %s113
    %p115 = scmp.eq.s32.totalorder %s21, 0
    %p116 = por %p114, %p115
    %s118 = sadd.s32 %s117, 1
    %p121 = scmp.eq.s32.totalorder %s15, 1
    %p122 = scmp.ne.s32.totalorder %s117, %s119
    %p123 = scmp.eq.s32.totalorder %s15, 0
    %p124 = por %p122, %p123
    %p125 = scmp.ne.s32.totalorder %s117, %s119
    %p126 = scmp.eq.s32.totalorder %s20, 1
    %p127 = por %p125, %p126
    %p128 = scmp.ne.s32.totalorder %s119, %s120
    %p129 = scmp.eq.s32.totalorder %s20, 0
    %p130 = por %p128, %p129
    %p131 = scmp.ne.s32.totalorder %s119, %s120
    %p132 = scmp.eq.s32.totalorder %s21, 1
    %p133 = por %p131, %p132
    %p135 = scmp.ne.s32.totalorder %s120, %s134
    %p136 = scmp.eq.s32.totalorder %s21, 0
    %p137 = por %p135, %p136
    %s139 = sadd.s32 %s138, 1
    %p142 = scmp.eq.s32.totalorder %s15, 1
    %p143 = scmp.ne.s32.totalorder %s138, %s140
    %p144 = scmp.eq.s32.totalorder %s15, 0
    %p145 = por %p143, %p144
    %p146 = scmp.ne.s32.totalorder %s138, %s140
    %p147 = scmp.eq.s32.totalorder %s20, 1
    %p148 = por %p146, %p147
    %p149 = scmp.ne.s32.totalorder %s140, %s141
    %p150 = scmp.eq.s32.totalorder %s20, 0
    %p151 = por %p149, %p150
    %p152 = scmp.ne.s32.totalorder %s140, %s141
    %p153 = scmp.eq.s32.totalorder %s21, 1
    %p154 = por %p152, %p153
    %p156 = scmp.ne.s32.totalorder %s141, %s155
    %p157 = scmp.eq.s32.totalorder %s21, 0
    %p158 = por %p156, %p157
    %s160 = sadd.s32 %s159, 1
    %p163 = scmp.eq.s32.totalorder %s15, 1
    %p164 = scmp.ne.s32.totalorder %s159, %s161
    %p165 = scmp.eq.s32.totalorder %s15, 0
    %p166 = por %p164, %p165
    %p167 = scmp.ne.s32.totalorder %s159, %s161
    %p168 = scmp.eq.s32.totalorder %s20, 1
    %p169 = por %p167, %p168
    %p170 = scmp.ne.s32.totalorder %s161, %s162
    %p171 = scmp.eq.s32.totalorder %s20, 0
    %p172 = por %p170, %p171
    %p173 = scmp.ne.s32.totalorder %s161, %s162
    %p174 = scmp.eq.s32.totalorder %s21, 1
    %p175 = por %p173, %p174
    %p177 = scmp.ne.s32.totalorder %s162, %s176
    %p178 = scmp.eq.s32.totalorder %s21, 0
    %p179 = por %p177, %p178
    %s181 = sadd.s32 %s180, 1
    %p184 = scmp.eq.s32.totalorder %s15, 1
    %p185 = scmp.ne.s32.totalorder %s180, %s182
    %p186 = scmp.eq.s32.totalorder %s15, 0
    %p187 = por %p185, %p186
    %p188 = scmp.ne.s32.totalorder %s180, %s182
    %p189 = scmp.eq.s32.totalorder %s20, 1
    %p190 = por %p188, %p189
    %p191 = scmp.ne.s32.totalorder %s182, %s183
    %p192 = scmp.eq.s32.totalorder %s20, 0
    %p193 = por %p191, %p192
    %p194 = scmp.ne.s32.totalorder %s182, %s183
    %p195 = scmp.eq.s32.totalorder %s21, 1
    %p196 = por %p194, %p195
    %p198 = scmp.ne.s32.totalorder %s183, %s197
    %p199 = scmp.eq.s32.totalorder %s21, 0
    %p200 = por %p198, %p199
    %s202 = sadd.s32 %s201, 1
    %p205 = scmp.eq.s32.totalorder %s15, 1
    %p206 = scmp.ne.s32.totalorder %s201, %s203
    %p207 = scmp.eq.s32.totalorder %s15, 0
    %p208 = por %p206, %p207
    %p209 = scmp.ne.s32.totalorder %s201, %s203
    %p210 = scmp.eq.s32.totalorder %s20, 1
    %p211 = por %p209, %p210
    %p212 = scmp.ne.s32.totalorder %s203, %s204
    %p213 = scmp.eq.s32.totalorder %s20, 0
    %p214 = por %p212, %p213
    %p215 = scmp.ne.s32.totalorder %s203, %s204
    %p216 = scmp.eq.s32.totalorder %s21, 1
    %p217 = por %p215, %p216
    %p219 = scmp.ne.s32.totalorder %s204, %s218
    %p220 = scmp.eq.s32.totalorder %s21, 0
    %p221 = por %p219, %p220
    %s222 = ssub.s32 %s15, %s22
    %p223 = scmp.eq.s32.totalorder %s222, 0
    %s225 = sadd.s32 %s224, 1
    %s226 = scalar_select %p223, %s224, %s225
    %p229 = pneg %p223
    %p230 = scmp.eq.s32.totalorder %s15, 1
    %p231 = por %p229, %p230
    %p232 = scmp.ne.s32.totalorder %s224, %s227
    %p233 = scmp.eq.s32.totalorder %s15, 0
    %p234 = por %p232, %p233
    %p235 = scmp.ne.s32.totalorder %s224, %s227
    %p236 = scmp.eq.s32.totalorder %s20, 1
    %p237 = por %p235, %p236
    %p238 = scmp.ne.s32.totalorder %s227, %s228
    %p239 = scmp.eq.s32.totalorder %s20, 0
    %p240 = por %p238, %p239
    %p241 = scmp.ne.s32.totalorder %s227, %s228
    %p242 = scmp.eq.s32.totalorder %s21, 1
    %p243 = por %p241, %p242
    %p245 = scmp.ne.s32.totalorder %s228, %s244
    %p246 = scmp.eq.s32.totalorder %s21, 0
    %p247 = por %p245, %p246
    %p248 = scmp.le.s32.totalorder 1, %s15
    %p249 = scmp.lt.s32.totalorder %s15, 3
    %p250 = pnand %p248, %p249
    %p251 = pneg %p250
    // Predicated region
    $region9: #{det_loss_pallas.1} parent=5 // pred_check
      _
    $region10: #{det_loss_pallas.1} parent=5 // pred_check_branch
      %253 = sbr.rel (%p250) target = $region12
    $region11: #{det_loss_pallas.1} parent=5 // pred_region
      %s254 = ssub.s32 %s15, 1
      // Predicated region
      $region13: #{det_loss_pallas.1} parent=11 // pred_check
        %p255 = pneg %p88
      $region14: #{det_loss_pallas.1} parent=11 // pred_check_branch
        %257 = sbr.rel (%p255) target = $region16
      $region15: #{det_loss_pallas.1} parent=11 // pred_region
        _
      $region16: #{det_loss_pallas.1} parent=11 // pred_fallthru
        _
      // Predicated region
      $region17: #{det_loss_pallas.1} parent=11 // pred_check
        %p258 = pneg %p109
      $region18: #{det_loss_pallas.1} parent=11 // pred_check_branch
        %260 = sbr.rel (%p258) target = $region20
      $region19: #{det_loss_pallas.1} parent=11 // pred_region
        _
      $region20: #{det_loss_pallas.1} parent=11 // pred_fallthru
        _
      // Predicated region
      $region21: #{det_loss_pallas.1} parent=11 // pred_check
        %p261 = pneg %p130
      $region22: #{det_loss_pallas.1} parent=11 // pred_check_branch
        %263 = sbr.rel (%p261) target = $region24
      $region23: #{det_loss_pallas.1} parent=11 // pred_region
        _
      $region24: #{det_loss_pallas.1} parent=11 // pred_fallthru
        _
      // Predicated region
      $region25: #{det_loss_pallas.1} parent=11 // pred_check
        %p264 = pneg %p151
      $region26: #{det_loss_pallas.1} parent=11 // pred_check_branch
        %266 = sbr.rel (%p264) target = $region28
      $region27: #{det_loss_pallas.1} parent=11 // pred_region
        _
      $region28: #{det_loss_pallas.1} parent=11 // pred_fallthru
        _
      // Predicated region
      $region29: #{det_loss_pallas.1} parent=11 // pred_check
        %p267 = pneg %p172
      $region30: #{det_loss_pallas.1} parent=11 // pred_check_branch
        %269 = sbr.rel (%p267) target = $region32
      $region31: #{det_loss_pallas.1} parent=11 // pred_region
        _
      $region32: #{det_loss_pallas.1} parent=11 // pred_fallthru
        _
      // Predicated region
      $region33: #{det_loss_pallas.1} parent=11 // pred_check
        %p270 = pneg %p193
      $region34: #{det_loss_pallas.1} parent=11 // pred_check_branch
        %272 = sbr.rel (%p270) target = $region36
      $region35: #{det_loss_pallas.1} parent=11 // pred_region
        _
      $region36: #{det_loss_pallas.1} parent=11 // pred_fallthru
        _
      // Predicated region
      $region37: #{det_loss_pallas.1} parent=11 // pred_check
        %p273 = pneg %p214
      $region38: #{det_loss_pallas.1} parent=11 // pred_check_branch
        %275 = sbr.rel (%p273) target = $region40
      $region39: #{det_loss_pallas.1} parent=11 // pred_region
        _
      $region40: #{det_loss_pallas.1} parent=11 // pred_fallthru
        _
    $region12: #{det_loss_pallas.1} parent=5 // pred_fallthru
      _
    %p276 = scmp.lt.s32.totalorder %s15, 2
    // Predicated region
    $region41: #{det_loss_pallas.1} parent=5 // pred_check
      %p277 = pneg %p276
    $region42: #{det_loss_pallas.1} parent=5 // pred_check_branch
      %279 = sbr.rel (%p277) target = $region44
    $region43: #{det_loss_pallas.1} parent=5 // pred_region
      // Predicated region
      $region45: #{det_loss_pallas.1} parent=43 // pred_check
        %p280 = pneg %p35
      $region46: #{det_loss_pallas.1} parent=43 // pred_check_branch
        %282 = sbr.rel (%p280) target = $region48
      $region47: #{det_loss_pallas.1} parent=43 // pred_region
        %p283 = scmp.lt.s32.totalorder %s15, 1
        %s284 = scalar_select %p283, %s15, 1
        %s285 = smul.addr %s284, 2
        %s286 = smul.addr %s285, 8
        %s287 = scalar_lea.vmem %s0, %s286
      $region48: #{det_loss_pallas.1} parent=43 // pred_fallthru
        _
      // Predicated region
      $region49: #{det_loss_pallas.1} parent=43 // pred_check
        %p288 = pneg %p61
      $region50: #{det_loss_pallas.1} parent=43 // pred_check_branch
        %290 = sbr.rel (%p288) target = $region52
      $region51: #{det_loss_pallas.1} parent=43 // pred_region
        %p291 = scmp.lt.s32.totalorder %s15, 1
        %s292 = scalar_select %p291, %s15, 1
        %s293 = smul.addr %s292, 2
        %s294 = smul.addr %s293, 8
        %s295 = scalar_lea.vmem %s1, %s294
      $region52: #{det_loss_pallas.1} parent=43 // pred_fallthru
        _
    $region44: #{det_loss_pallas.1} parent=5 // pred_fallthru
      _
    %p296 = scmp.le.s32.totalorder 1, %s15
    %p297 = scmp.lt.s32.totalorder %s15, 3
    %p298 = pnand %p296, %p297
    %p299 = pneg %p298
    // Predicated region
    $region53: #{det_loss_pallas.1} parent=5 // pred_check
      _
    $region54: #{det_loss_pallas.1} parent=5 // pred_check_branch
      %301 = sbr.rel (%p298) target = $region56
    $region55: #{det_loss_pallas.1} parent=5 // pred_region
      %s302 = ssub.s32 %s15, 1
      %p303 = scmp.lt.s32.totalorder %s20, 1
      %s304 = scalar_select %p303, %s20, 1
      %s305 = smul.addr %s304, 2
      %s306 = smul.addr %s305, 8
      %s307 = scalar_lea.vmem %s0, %s306
      %p308 = pneg %p41
      %p309 = pneg %p38
      %p310 = scmp.lt.s32.totalorder %s20, 1
      %s311 = scalar_select %p310, %s20, 1
      %s312 = smul.addr %s311, 2
      %s313 = smul.addr %s312, 8
      %s314 = scalar_lea.vmem %s1, %s313
      %p315 = pneg %p67
      %p316 = pneg %p64
      %p317 = pneg %p88
      %p318 = pneg %p85
      %p319 = pneg %p109
      %p320 = pneg %p106
      %p321 = pneg %p130
      %p322 = pneg %p127
      %p323 = pneg %p151
      %p324 = pneg %p148
      %p325 = pneg %p172
      %p326 = pneg %p169
      %p327 = pneg %p193
      %p328 = pneg %p190
      %p329 = pneg %p214
      %p330 = pneg %p211
      %p331 = pneg %p240
      %p332 = pneg %p237
      %p333 = scmp.lt.s32.totalorder %s20, 1
      %s334 = scalar_select %p333, %s20, 1
      %s335 = smul.addr %s334, 8
      %s336 = scalar_lea.vmem %s9, %s335
      %p337 = scmp.lt.s32.totalorder %s20, 1
      %s338 = scalar_select %p337, %s20, 1
      %s339 = smul.addr %s338, 2
      %s340 = smul.addr %s339, 8
      %s341 = scalar_lea.vmem %s0, %s340
      %p342 = scmp.lt.s32.totalorder %s20, 1
      %s343 = scalar_select %p342, %s20, 1
      %s344 = smul.addr %s343, 2
      %s345 = smul.addr %s344, 8
      %s346 = scalar_lea.vmem %s1, %s345
      %p347 = scmp.lt.s32.totalorder %s20, 1
      %s348 = scalar_select %p347, %s20, 1
      %s349 = smul.addr %s348, 8
      %s350 = scalar_lea.vmem %s9, %s349
      %v351 = vld [vmem:[%s341] sm:$0xff]
      %v352 = vld [vmem:[%s341 + $0x8] sm:$0xff]
      %v353 = vld [vmem:[%s346] sm:$0xff]
      %v354 = vld [vmem:[%s346 + $0x8] sm:$0xff]
      %v355 = vxor.u32 %v351, 2147483648
      %v356 = vxor.u32 %v352, 2147483648
      %v357 = vmul.f32 %v355, 1.442695
      %v358 = vpow.pop %v357
      %v359 = vmul.f32 %v356, 1.442695
      %v360 = vpow.pop %v359
      %v361 = vadd.f32 %v358, 1.0
      %v362 = vadd.f32 %v360, 1.0
      %v363 = vrcp.pop %v361
      %v364 = vmul.f32 1.0, %v363
      %v365 = vrcp.pop %v362
      %v366 = vmul.f32 1.0, %v365
      %v367 = vmax.f32 %v364, 0.0001
      %v368 = vmax.f32 %v366, 0.0001
      %v369 = vmin.f32 %v367, 0.9999
      %v370 = vmin.f32 %v368, 0.9999
      %vm371 = vcmp.eq.f32.partialorder %v353, 1.0
      %vm372 = vcmp.eq.f32.partialorder %v354, 1.0
      %v373 = vsel %vm371, 1, 0
      %v374 = vsel %vm372, 1, 0
      %v375 = vcvt.s32.f32 %v373
      %v376 = vcvt.s32.f32 %v374
      %v377 = vsub.f32 1.0, %v375
      %v378 = vsub.f32 1.0, %v376
      %v379 = vsub.f32 1.0, %v353
      %v380 = vsub.f32 1.0, %v354
      %v381 = vmul.f32 %v379, %v379
      %v382 = vmul.f32 %v380, %v380
      %v383 = vmul.f32 %v381, %v381
      %v384 = vmul.f32 %v382, %v382
      %v385 = vlog2.pop %v369
      %v386 = vmul.f32 %v385, 0.6931472
      %v387 = vlog2.pop %v370
      %v388 = vmul.f32 %v387, 0.6931472
      %v389 = vsub.f32 1.0, %v369
      %v390 = vsub.f32 1.0, %v370
      %v391 = vmul.f32 %v389, %v389
      %v392 = vmul.f32 %v390, %v390
      %v393 = vmul.f32 %v386, %v391
      %v394 = vmul.f32 %v388, %v392
      %v395 = vmul.f32 %v393, %v375
      %v396 = vmul.f32 %v394, %v376
      %v397 = vlog2.pop %v389
      %v398 = vmul.f32 %v397, 0.6931472
      %v399 = vlog2.pop %v390
      %v400 = vmul.f32 %v399, 0.6931472
      %v401 = vmul.f32 %v398, %v369
      %v402 = vmul.f32 %v400, %v370
      %v403 = vmul.f32 %v401, %v369
      %v404 = vmul.f32 %v402, %v370
      %v405 = vmul.f32 %v403, %v383
      %v406 = vmul.f32 %v404, %v384
      %v407 = vmul.f32 %v405, %v377
      %v408 = vmul.f32 %v406, %v378
      %v409 = vadd.f32 %v375, %v376
      %410 = vadd.xlane.f32.xlu0 %v409
      %v411 = vpop.xlane.xlu0 %410
      %v412 = vrot.slane %v411, 4
      %v413 = vadd.f32 %v411, %v412
      %v414 = vrot.slane %v413, 2
      %v415 = vadd.f32 %v413, %v414
      %v416 = vrot.slane %v415, 1
      %v417 = vadd.f32 %v415, %v416
      %s418 = vtos %v417
      %v419 = vadd.f32 %v395, %v396
      %420 = vadd.xlane.f32.xlu0 %v419
      %v421 = vpop.xlane.xlu0 %420
      %v422 = vrot.slane %v421, 4
      %v423 = vadd.f32 %v421, %v422
      %v424 = vrot.slane %v423, 2
      %v425 = vadd.f32 %v423, %v424
      %v426 = vrot.slane %v425, 1
      %v427 = vadd.f32 %v425, %v426
      %s428 = vtos %v427
      %v429 = vadd.f32 %v407, %v408
      %430 = vadd.xlane.f32.xlu0 %v429
      %v431 = vpop.xlane.xlu0 %430
      %v432 = vrot.slane %v431, 4
      %v433 = vadd.f32 %v431, %v432
      %v434 = vrot.slane %v433, 2
      %v435 = vadd.f32 %v433, %v434
      %v436 = vrot.slane %v435, 1
      %v437 = vadd.f32 %v435, %v436
      %s438 = vtos %v437
      %v439 = vlaneseq
      %v440 = vand.u32 %v439, 127
      %v441 = vlaneseq
      %v442 = vshrl.u32 %v441, 7
      %vm443 = vcmp.eq.s32.totalorder %v442, 0
      %vm444 = vcmp.eq.s32.totalorder %v440, 0
      %vm445 = vmand %vm443, %vm444
      %v446 = vstv %s418
      %v447 = vsel %vm445, %v446, 0.0
      %vm448 = vcmp.eq.s32.totalorder %v440, 1
      %vm449 = vmand %vm443, %vm448
      %v450 = vstv %s428
      %v451 = vsel %vm449, %v450, %v447
      %vm452 = vcmp.eq.s32.totalorder %v440, 2
      %vm453 = vmand %vm443, %vm452
      %v454 = vstv %s438
      %v455 = vsel %vm453, %v454, %v451
      %456 = vst [vmem:[%s350] sm:$0xff] %v455
      %p457 = scmp.eq.s32.totalorder %s20, 1
      // Predicated region
      $region57: #{det_loss_pallas.1} parent=55 // pred_check
        %p458 = pneg %p457
      $region58: #{det_loss_pallas.1} parent=55 // pred_check_branch
        %460 = sbr.rel (%p458) target = $region60
      $region59: #{det_loss_pallas.1} parent=55 // pred_region
        %v461 = vld [vmem:[%s4] sm:$0xff]
        %462 = vset.pattern.permute.xlu0 0
        %463 = vperm.xlu0 %462, %v461
        %v464 = vpop.permute.xlu0 %463
        %vm465 = vcmp.eq.s32.totalorder %v440, %v464
        %v466 = vsel %vm465, 1, 0
        %v467 = vcvt.s32.f32 %v466
        %v468 = vld [vmem:[%s5] sm:$0xff]
        %469 = vset.pattern.permute.xlu0 0
        %470 = vperm.xlu0 %469, %v468
        %v471 = vpop.permute.xlu0 %470
        %vm472 = vcmp.eq.s32.totalorder %v440, %v471
        %v473 = vsel %vm472, 1, 0
        %v474 = vcvt.s32.f32 %v473
        %v475 = vld [vmem:[%s6] sm:$0xff]
        %v476 = vld [vmem:[%s2] sm:$0x3]
        %vm477 = vcmask 15360
        %v479 = vsel %vm477, %v467, 0
        %vm481 = vcmask 1041408
        %v483 = vsel %vm481, %v476, 0
        %485 = vmatprep.subr.mxu0 0.0
        %486 = vmatpush1.msra.mxu0 0.0
        %487 = vmatprep.subr.mxu0 0.0
        %488 = vmatpush1.msra.mxu0 0.0
        %489 = vmatprep.subr.mxu0 0.0
        %490 = vmatpush1.msra.mxu0 0.0
        %491 = vmatprep.subr.mxu0 0.0
        %492 = vmatpush1.msra.mxu0 0.0
        %493 = vmatprep.subr.mxu0 0.0
        %494 = vmatpush1.msra.mxu0 0.0
        %495 = vmatprep.subr.mxu0 0.0
        %496 = vmatpush1.msra.mxu0 0.0
        %497 = vmatprep.subr.mxu0 0.0
        %498 = vmatpush1.msra.mxu0 0.0
        %499 = vmatprep.subr.mxu0 0.0
        %500 = vmatpush1.msra.mxu0 0.0
        %501 = vmatprep.subr.mxu0 0.0
        %502 = vmatpush1.msra.mxu0 0.0
        %503 = vmatprep.subr.mxu0 0.0
        %504 = vmatpush1.msra.mxu0 0.0
        %505 = vmatprep.subr.mxu0 0.0
        %506 = vmatpush1.msra.mxu0 0.0
        %507 = vmatprep.subr.mxu0 0.0
        %508 = vmatpush1.msra.mxu0 0.0
        %509 = vmatprep.subr.mxu0 0.0
        %510 = vmatpush1.msra.mxu0 0.0
        %511 = vmatprep.subr.mxu0 0.0
        %512 = vmatpush1.msra.mxu0 0.0
        %513 = vmatprep.subr.mxu0 0.0
        %514 = vmatpush1.msra.mxu0 0.0
        %515 = vmatprep.subr.mxu0 0.0
        %516 = vmatpush1.msra.mxu0 %v483
        %517 = vmatprep.subr.mxu0 0.0
        %518 = vmatpush2.msra.mxu0 0.0
        %519 = vmatprep.subr.mxu0 0.0
        %520 = vmatpush2.msra.mxu0 0.0
        %521 = vmatprep.subr.mxu0 0.0
        %522 = vmatpush2.msra.mxu0 0.0
        %523 = vmatprep.subr.mxu0 0.0
        %524 = vmatpush2.msra.mxu0 0.0
        %525 = vmatprep.subr.mxu0 0.0
        %526 = vmatpush2.msra.mxu0 0.0
        %527 = vmatprep.subr.mxu0 0.0
        %528 = vmatpush2.msra.mxu0 0.0
        %529 = vmatprep.subr.mxu0 0.0
        %530 = vmatpush2.msra.mxu0 0.0
        %531 = vmatprep.subr.mxu0 0.0
        %532 = vmatpush2.msra.mxu0 0.0
        %533 = vmatprep.subr.mxu0 0.0
        %534 = vmatpush2.msra.mxu0 0.0
        %535 = vmatprep.subr.mxu0 0.0
        %536 = vmatpush2.msra.mxu0 0.0
        %537 = vmatprep.subr.mxu0 0.0
        %538 = vmatpush2.msra.mxu0 0.0
        %539 = vmatprep.subr.mxu0 0.0
        %540 = vmatpush2.msra.mxu0 0.0
        %541 = vmatprep.subr.mxu0 0.0
        %542 = vmatpush2.msra.mxu0 0.0
        %543 = vmatprep.subr.mxu0 0.0
        %544 = vmatpush2.msra.mxu0 0.0
        %545 = vmatprep.subr.mxu0 0.0
        %546 = vmatpush2.msra.mxu0 0.0
        %547 = vmatprep.subr.mxu0 0.0
        %548 = vmatpush2.msra.mxu0 0.0
        %549 = vmatprep.mubr.f32.mxu0 0.0
        %550 = vmatmul.mubr.f32.gmra.mxu0 %v479
        %v551 = vpop.f32.mrf.mxu0
        %v552 = vadd.f32 0.0, %v551
        %v553 = vpop.f32.mrf.mxu0
        %554 = vdwg.mxu0
        %v555 = vmul.f32 %v552, %v474
        %556 = vadd.xlane.f32.xlu0 %v555
        %v557 = vpop.xlane.xlu0 %556
        %v558 = vld [vmem:[%s7] sm:$0xff]
        %v559 = vmul.f32 %v557, %v475
        %v560 = vmul.f32 %v558, %v475
        %v561 = vsub.f32 %v559, %v560
        %v562 = vand.u32 2147483647, %v561
        %vm563 = vcmask 7168
        %v564 = vsel %vm563, %v562, 0.0
        %565 = vadd.xlane.f32.xlu0 %v564
        %v566 = vpop.xlane.xlu0 %565
        %v567 = vrot.slane %v566, 4
        %v568 = vadd.f32 %v566, %v567
        %v569 = vrot.slane %v568, 2
        %v570 = vadd.f32 %v568, %v569
        %v571 = vrot.slane %v570, 1
        %v572 = vadd.f32 %v570, %v571
        %s573 = vtos %v572
        %s574 = sadd.f32 %s573, 0.0
        %s575 = scalar_lea.vmem %s2, 2
        %v576 = vld [vmem:[%s575] sm:$0x3]
        %v578 = vsel %vm481, %v576, 0
        %580 = vmatprep.subr.mxu0 0.0
        %581 = vmatpush1.msra.mxu0 0.0
        %582 = vmatprep.subr.mxu0 0.0
        %583 = vmatpush1.msra.mxu0 0.0
        %584 = vmatprep.subr.mxu0 0.0
        %585 = vmatpush1.msra.mxu0 0.0
        %586 = vmatprep.subr.mxu0 0.0
        %587 = vmatpush1.msra.mxu0 0.0
        %588 = vmatprep.subr.mxu0 0.0
        %589 = vmatpush1.msra.mxu0 0.0
        %590 = vmatprep.subr.mxu0 0.0
        %591 = vmatpush1.msra.mxu0 0.0
        %592 = vmatprep.subr.mxu0 0.0
        %593 = vmatpush1.msra.mxu0 0.0
        %594 = vmatprep.subr.mxu0 0.0
        %595 = vmatpush1.msra.mxu0 0.0
        %596 = vmatprep.subr.mxu0 0.0
        %597 = vmatpush1.msra.mxu0 0.0
        %598 = vmatprep.subr.mxu0 0.0
        %599 = vmatpush1.msra.mxu0 0.0
        %600 = vmatprep.subr.mxu0 0.0
        %601 = vmatpush1.msra.mxu0 0.0
        %602 = vmatprep.subr.mxu0 0.0
        %603 = vmatpush1.msra.mxu0 0.0
        %604 = vmatprep.subr.mxu0 0.0
        %605 = vmatpush1.msra.mxu0 0.0
        %606 = vmatprep.subr.mxu0 0.0
        %607 = vmatpush1.msra.mxu0 0.0
        %608 = vmatprep.subr.mxu0 0.0
        %609 = vmatpush1.msra.mxu0 0.0
        %610 = vmatprep.subr.mxu0 0.0
        %611 = vmatpush1.msra.mxu0 %v578
        %612 = vmatprep.subr.mxu0 0.0
        %613 = vmatpush2.msra.mxu0 0.0
        %614 = vmatprep.subr.mxu0 0.0
        %615 = vmatpush2.msra.mxu0 0.0
        %616 = vmatprep.subr.mxu0 0.0
        %617 = vmatpush2.msra.mxu0 0.0
        %618 = vmatprep.subr.mxu0 0.0
        %619 = vmatpush2.msra.mxu0 0.0
        %620 = vmatprep.subr.mxu0 0.0
        %621 = vmatpush2.msra.mxu0 0.0
        %622 = vmatprep.subr.mxu0 0.0
        %623 = vmatpush2.msra.mxu0 0.0
        %624 = vmatprep.subr.mxu0 0.0
        %625 = vmatpush2.msra.mxu0 0.0
        %626 = vmatprep.subr.mxu0 0.0
        %627 = vmatpush2.msra.mxu0 0.0
        %628 = vmatprep.subr.mxu0 0.0
        %629 = vmatpush2.msra.mxu0 0.0
        %630 = vmatprep.subr.mxu0 0.0
        %631 = vmatpush2.msra.mxu0 0.0
        %632 = vmatprep.subr.mxu0 0.0
        %633 = vmatpush2.msra.mxu0 0.0
        %634 = vmatprep.subr.mxu0 0.0
        %635 = vmatpush2.msra.mxu0 0.0
        %636 = vmatprep.subr.mxu0 0.0
        %637 = vmatpush2.msra.mxu0 0.0
        %638 = vmatprep.subr.mxu0 0.0
        %639 = vmatpush2.msra.mxu0 0.0
        %640 = vmatprep.subr.mxu0 0.0
        %641 = vmatpush2.msra.mxu0 0.0
        %642 = vmatprep.subr.mxu0 0.0
        %643 = vmatpush2.msra.mxu0 0.0
        %644 = vmatprep.mubr.f32.mxu0 0.0
        %645 = vmatmul.mubr.f32.gmra.mxu0 %v479
        %v646 = vpop.f32.mrf.mxu0
        %v647 = vadd.f32 0.0, %v646
        %v648 = vpop.f32.mrf.mxu0
        %649 = vdwg.mxu0
        %v650 = vmul.f32 %v647, %v474
        %651 = vadd.xlane.f32.xlu0 %v650
        %v652 = vpop.xlane.xlu0 %651
        %v653 = vmul.f32 %v652, %v475
        %655 = vrot.lane.b32.xlu0 %v475, 1
        %v656 = vpop.permute.xlu0 %655
        %v658 = vmul.f32 %v558, %v656
        %660 = vrot.lane.b32.xlu0 %v658, 127
        %v661 = vpop.permute.xlu0 %660
        %v663 = vsub.f32 %v653, %v661
        %v664 = vand.u32 2147483647, %v663
        %v665 = vsel %vm563, %v664, 0.0
        %666 = vadd.xlane.f32.xlu0 %v665
        %v667 = vpop.xlane.xlu0 %666
        %v668 = vrot.slane %v667, 4
        %v669 = vadd.f32 %v667, %v668
        %v670 = vrot.slane %v669, 2
        %v671 = vadd.f32 %v669, %v670
        %v672 = vrot.slane %v671, 1
        %v673 = vadd.f32 %v671, %v672
        %s674 = vtos %v673
        %s675 = sadd.f32 %s574, %s674
        %v676 = vld [vmem:[%s3] sm:$0x3]
        %v678 = vsel %vm481, %v676, 0
        %680 = vmatprep.subr.mxu0 0.0
        %681 = vmatpush1.msra.mxu0 0.0
        %682 = vmatprep.subr.mxu0 0.0
        %683 = vmatpush1.msra.mxu0 0.0
        %684 = vmatprep.subr.mxu0 0.0
        %685 = vmatpush1.msra.mxu0 0.0
        %686 = vmatprep.subr.mxu0 0.0
        %687 = vmatpush1.msra.mxu0 0.0
        %688 = vmatprep.subr.mxu0 0.0
        %689 = vmatpush1.msra.mxu0 0.0
        %690 = vmatprep.subr.mxu0 0.0
        %691 = vmatpush1.msra.mxu0 0.0
        %692 = vmatprep.subr.mxu0 0.0
        %693 = vmatpush1.msra.mxu0 0.0
        %694 = vmatprep.subr.mxu0 0.0
        %695 = vmatpush1.msra.mxu0 0.0
        %696 = vmatprep.subr.mxu0 0.0
        %697 = vmatpush1.msra.mxu0 0.0
        %698 = vmatprep.subr.mxu0 0.0
        %699 = vmatpush1.msra.mxu0 0.0
        %700 = vmatprep.subr.mxu0 0.0
        %701 = vmatpush1.msra.mxu0 0.0
        %702 = vmatprep.subr.mxu0 0.0
        %703 = vmatpush1.msra.mxu0 0.0
        %704 = vmatprep.subr.mxu0 0.0
        %705 = vmatpush1.msra.mxu0 0.0
        %706 = vmatprep.subr.mxu0 0.0
        %707 = vmatpush1.msra.mxu0 0.0
        %708 = vmatprep.subr.mxu0 0.0
        %709 = vmatpush1.msra.mxu0 0.0
        %710 = vmatprep.subr.mxu0 0.0
        %711 = vmatpush1.msra.mxu0 %v678
        %712 = vmatprep.subr.mxu0 0.0
        %713 = vmatpush2.msra.mxu0 0.0
        %714 = vmatprep.subr.mxu0 0.0
        %715 = vmatpush2.msra.mxu0 0.0
        %716 = vmatprep.subr.mxu0 0.0
        %717 = vmatpush2.msra.mxu0 0.0
        %718 = vmatprep.subr.mxu0 0.0
        %719 = vmatpush2.msra.mxu0 0.0
        %720 = vmatprep.subr.mxu0 0.0
        %721 = vmatpush2.msra.mxu0 0.0
        %722 = vmatprep.subr.mxu0 0.0
        %723 = vmatpush2.msra.mxu0 0.0
        %724 = vmatprep.subr.mxu0 0.0
        %725 = vmatpush2.msra.mxu0 0.0
        %726 = vmatprep.subr.mxu0 0.0
        %727 = vmatpush2.msra.mxu0 0.0
        %728 = vmatprep.subr.mxu0 0.0
        %729 = vmatpush2.msra.mxu0 0.0
        %730 = vmatprep.subr.mxu0 0.0
        %731 = vmatpush2.msra.mxu0 0.0
        %732 = vmatprep.subr.mxu0 0.0
        %733 = vmatpush2.msra.mxu0 0.0
        %734 = vmatprep.subr.mxu0 0.0
        %735 = vmatpush2.msra.mxu0 0.0
        %736 = vmatprep.subr.mxu0 0.0
        %737 = vmatpush2.msra.mxu0 0.0
        %738 = vmatprep.subr.mxu0 0.0
        %739 = vmatpush2.msra.mxu0 0.0
        %740 = vmatprep.subr.mxu0 0.0
        %741 = vmatpush2.msra.mxu0 0.0
        %742 = vmatprep.subr.mxu0 0.0
        %743 = vmatpush2.msra.mxu0 0.0
        %744 = vmatprep.mubr.f32.mxu0 0.0
        %745 = vmatmul.mubr.f32.gmra.mxu0 %v479
        %v746 = vpop.f32.mrf.mxu0
        %v747 = vadd.f32 0.0, %v746
        %v748 = vpop.f32.mrf.mxu0
        %749 = vdwg.mxu0
        %v750 = vmul.f32 %v747, %v474
        %751 = vadd.xlane.f32.xlu0 %v750
        %v752 = vpop.xlane.xlu0 %751
        %v753 = vld [vmem:[%s8] sm:$0xff]
        %v754 = vmul.f32 %v752, %v475
        %v755 = vmul.f32 %v753, %v475
        %v756 = vsub.f32 %v754, %v755
        %v757 = vand.u32 2147483647, %v756
        %v758 = vsel %vm563, %v757, 0.0
        %759 = vadd.xlane.f32.xlu0 %v758
        %v760 = vpop.xlane.xlu0 %759
        %v761 = vrot.slane %v760, 4
        %v762 = vadd.f32 %v760, %v761
        %v763 = vrot.slane %v762, 2
        %v764 = vadd.f32 %v762, %v763
        %v765 = vrot.slane %v764, 1
        %v766 = vadd.f32 %v764, %v765
        %s767 = vtos %v766
        %s768 = sadd.f32 %s767, 0.0
        %s769 = scalar_lea.vmem %s3, 2
        %v770 = vld [vmem:[%s769] sm:$0x3]
        %v772 = vsel %vm481, %v770, 0
        %774 = vmatprep.subr.mxu0 0.0
        %775 = vmatpush1.msra.mxu0 0.0
        %776 = vmatprep.subr.mxu0 0.0
        %777 = vmatpush1.msra.mxu0 0.0
        %778 = vmatprep.subr.mxu0 0.0
        %779 = vmatpush1.msra.mxu0 0.0
        %780 = vmatprep.subr.mxu0 0.0
        %781 = vmatpush1.msra.mxu0 0.0
        %782 = vmatprep.subr.mxu0 0.0
        %783 = vmatpush1.msra.mxu0 0.0
        %784 = vmatprep.subr.mxu0 0.0
        %785 = vmatpush1.msra.mxu0 0.0
        %786 = vmatprep.subr.mxu0 0.0
        %787 = vmatpush1.msra.mxu0 0.0
        %788 = vmatprep.subr.mxu0 0.0
        %789 = vmatpush1.msra.mxu0 0.0
        %790 = vmatprep.subr.mxu0 0.0
        %791 = vmatpush1.msra.mxu0 0.0
        %792 = vmatprep.subr.mxu0 0.0
        %793 = vmatpush1.msra.mxu0 0.0
        %794 = vmatprep.subr.mxu0 0.0
        %795 = vmatpush1.msra.mxu0 0.0
        %796 = vmatprep.subr.mxu0 0.0
        %797 = vmatpush1.msra.mxu0 0.0
        %798 = vmatprep.subr.mxu0 0.0
        %799 = vmatpush1.msra.mxu0 0.0
        %800 = vmatprep.subr.mxu0 0.0
        %801 = vmatpush1.msra.mxu0 0.0
        %802 = vmatprep.subr.mxu0 0.0
        %803 = vmatpush1.msra.mxu0 0.0
        %804 = vmatprep.subr.mxu0 0.0
        %805 = vmatpush1.msra.mxu0 %v772
        %806 = vmatprep.subr.mxu0 0.0
        %807 = vmatpush2.msra.mxu0 0.0
        %808 = vmatprep.subr.mxu0 0.0
        %809 = vmatpush2.msra.mxu0 0.0
        %810 = vmatprep.subr.mxu0 0.0
        %811 = vmatpush2.msra.mxu0 0.0
        %812 = vmatprep.subr.mxu0 0.0
        %813 = vmatpush2.msra.mxu0 0.0
        %814 = vmatprep.subr.mxu0 0.0
        %815 = vmatpush2.msra.mxu0 0.0
        %816 = vmatprep.subr.mxu0 0.0
        %817 = vmatpush2.msra.mxu0 0.0
        %818 = vmatprep.subr.mxu0 0.0
        %819 = vmatpush2.msra.mxu0 0.0
        %820 = vmatprep.subr.mxu0 0.0
        %821 = vmatpush2.msra.mxu0 0.0
        %822 = vmatprep.subr.mxu0 0.0
        %823 = vmatpush2.msra.mxu0 0.0
        %824 = vmatprep.subr.mxu0 0.0
        %825 = vmatpush2.msra.mxu0 0.0
        %826 = vmatprep.subr.mxu0 0.0
        %827 = vmatpush2.msra.mxu0 0.0
        %828 = vmatprep.subr.mxu0 0.0
        %829 = vmatpush2.msra.mxu0 0.0
        %830 = vmatprep.subr.mxu0 0.0
        %831 = vmatpush2.msra.mxu0 0.0
        %832 = vmatprep.subr.mxu0 0.0
        %833 = vmatpush2.msra.mxu0 0.0
        %834 = vmatprep.subr.mxu0 0.0
        %835 = vmatpush2.msra.mxu0 0.0
        %836 = vmatprep.subr.mxu0 0.0
        %837 = vmatpush2.msra.mxu0 0.0
        %838 = vmatprep.mubr.f32.mxu0 0.0
        %839 = vmatmul.mubr.f32.gmra.mxu0 %v479
        %v840 = vpop.f32.mrf.mxu0
        %v841 = vadd.f32 0.0, %v840
        %v842 = vpop.f32.mrf.mxu0
        %843 = vdwg.mxu0
        %v844 = vmul.f32 %v841, %v474
        %845 = vadd.xlane.f32.xlu0 %v844
        %v846 = vpop.xlane.xlu0 %845
        %v847 = vmul.f32 %v846, %v475
        %v848 = vmul.f32 %v753, %v656
        %850 = vrot.lane.b32.xlu0 %v848, 127
        %v851 = vpop.permute.xlu0 %850
        %v853 = vsub.f32 %v847, %v851
        %v854 = vand.u32 2147483647, %v853
        %v855 = vsel %vm563, %v854, 0.0
        %856 = vadd.xlane.f32.xlu0 %v855
        %v857 = vpop.xlane.xlu0 %856
        %v858 = vrot.slane %v857, 4
        %v859 = vadd.f32 %v857, %v858
        %v860 = vrot.slane %v859, 2
        %v861 = vadd.f32 %v859, %v860
        %v862 = vrot.slane %v861, 1
        %v863 = vadd.f32 %v861, %v862
        %s864 = vtos %v863
        %s865 = sadd.f32 %s768, %s864
        %866 = vset.pattern.permute.xlu0 1
        %867 = vperm.xlu0 %866, %v461
        %v868 = vpop.permute.xlu0 %867
        %vm869 = vcmp.eq.s32.totalorder %v440, %v868
        %v870 = vsel %vm869, 1, 0
        %v871 = vcvt.s32.f32 %v870
        %872 = vset.pattern.permute.xlu0 1
        %873 = vperm.xlu0 %872, %v468
        %v874 = vpop.permute.xlu0 %873
        %vm875 = vcmp.eq.s32.totalorder %v440, %v874
        %v876 = vsel %vm875, 1, 0
        %v877 = vcvt.s32.f32 %v876
        %s878 = scalar_lea.vmem %s2, 4
        %v879 = vld [vmem:[%s878] sm:$0x3]
        %v881 = vsel %vm477, %v871, 0
        %v884 = vsel %vm481, %v879, 0
        %886 = vmatprep.subr.mxu0 0.0
        %887 = vmatpush1.msra.mxu0 0.0
        %888 = vmatprep.subr.mxu0 0.0
        %889 = vmatpush1.msra.mxu0 0.0
        %890 = vmatprep.subr.mxu0 0.0
        %891 = vmatpush1.msra.mxu0 0.0
        %892 = vmatprep.subr.mxu0 0.0
        %893 = vmatpush1.msra.mxu0 0.0
        %894 = vmatprep.subr.mxu0 0.0
        %895 = vmatpush1.msra.mxu0 0.0
        %896 = vmatprep.subr.mxu0 0.0
        %897 = vmatpush1.msra.mxu0 0.0
        %898 = vmatprep.subr.mxu0 0.0
        %899 = vmatpush1.msra.mxu0 0.0
        %900 = vmatprep.subr.mxu0 0.0
        %901 = vmatpush1.msra.mxu0 0.0
        %902 = vmatprep.subr.mxu0 0.0
        %903 = vmatpush1.msra.mxu0 0.0
        %904 = vmatprep.subr.mxu0 0.0
        %905 = vmatpush1.msra.mxu0 0.0
        %906 = vmatprep.subr.mxu0 0.0
        %907 = vmatpush1.msra.mxu0 0.0
        %908 = vmatprep.subr.mxu0 0.0
        %909 = vmatpush1.msra.mxu0 0.0
        %910 = vmatprep.subr.mxu0 0.0
        %911 = vmatpush1.msra.mxu0 0.0
        %912 = vmatprep.subr.mxu0 0.0
        %913 = vmatpush1.msra.mxu0 0.0
        %914 = vmatprep.subr.mxu0 0.0
        %915 = vmatpush1.msra.mxu0 0.0
        %916 = vmatprep.subr.mxu0 0.0
        %917 = vmatpush1.msra.mxu0 %v884
        %918 = vmatprep.subr.mxu0 0.0
        %919 = vmatpush2.msra.mxu0 0.0
        %920 = vmatprep.subr.mxu0 0.0
        %921 = vmatpush2.msra.mxu0 0.0
        %922 = vmatprep.subr.mxu0 0.0
        %923 = vmatpush2.msra.mxu0 0.0
        %924 = vmatprep.subr.mxu0 0.0
        %925 = vmatpush2.msra.mxu0 0.0
        %926 = vmatprep.subr.mxu0 0.0
        %927 = vmatpush2.msra.mxu0 0.0
        %928 = vmatprep.subr.mxu0 0.0
        %929 = vmatpush2.msra.mxu0 0.0
        %930 = vmatprep.subr.mxu0 0.0
        %931 = vmatpush2.msra.mxu0 0.0
        %932 = vmatprep.subr.mxu0 0.0
        %933 = vmatpush2.msra.mxu0 0.0
        %934 = vmatprep.subr.mxu0 0.0
        %935 = vmatpush2.msra.mxu0 0.0
        %936 = vmatprep.subr.mxu0 0.0
        %937 = vmatpush2.msra.mxu0 0.0
        %938 = vmatprep.subr.mxu0 0.0
        %939 = vmatpush2.msra.mxu0 0.0
        %940 = vmatprep.subr.mxu0 0.0
        %941 = vmatpush2.msra.mxu0 0.0
        %942 = vmatprep.subr.mxu0 0.0
        %943 = vmatpush2.msra.mxu0 0.0
        %944 = vmatprep.subr.mxu0 0.0
        %945 = vmatpush2.msra.mxu0 0.0
        %946 = vmatprep.subr.mxu0 0.0
        %947 = vmatpush2.msra.mxu0 0.0
        %948 = vmatprep.subr.mxu0 0.0
        %949 = vmatpush2.msra.mxu0 0.0
        %950 = vmatprep.mubr.f32.mxu0 0.0
        %951 = vmatmul.mubr.f32.gmra.mxu0 %v881
        %v952 = vpop.f32.mrf.mxu0
        %v953 = vadd.f32 0.0, %v952
        %v954 = vpop.f32.mrf.mxu0
        %955 = vdwg.mxu0
        %v956 = vmul.f32 %v953, %v877
        %957 = vadd.xlane.f32.xlu0 %v956
        %v958 = vpop.xlane.xlu0 %957
        %v959 = vmul.f32 %v958, %v475
        %v960 = vsub.f32 %v959, %v661
        %v961 = vand.u32 2147483647, %v960
        %963 = vrot.lane.b32.xlu0 %v961, 127
        %v964 = vpop.permute.xlu0 %963
        %v966 = vsel %vm563, %v964, 0.0
        %967 = vadd.xlane.f32.xlu0 %v966
        %v968 = vpop.xlane.xlu0 %967
        %v969 = vrot.slane %v968, 4
        %v970 = vadd.f32 %v968, %v969
        %v971 = vrot.slane %v970, 2
        %v972 = vadd.f32 %v970, %v971
        %v973 = vrot.slane %v972, 1
        %v974 = vadd.f32 %v972, %v973
        %s975 = vtos %v974
        %s976 = sadd.f32 %s675, %s975
        %s977 = scalar_lea.vmem %s2, 6
        %v978 = vld [vmem:[%s977] sm:$0x3]
        %v980 = vsel %vm481, %v978, 0
        %982 = vmatprep.subr.mxu0 0.0
        %983 = vmatpush1.msra.mxu0 0.0
        %984 = vmatprep.subr.mxu0 0.0
        %985 = vmatpush1.msra.mxu0 0.0
        %986 = vmatprep.subr.mxu0 0.0
        %987 = vmatpush1.msra.mxu0 0.0
        %988 = vmatprep.subr.mxu0 0.0
        %989 = vmatpush1.msra.mxu0 0.0
        %990 = vmatprep.subr.mxu0 0.0
        %991 = vmatpush1.msra.mxu0 0.0
        %992 = vmatprep.subr.mxu0 0.0
        %993 = vmatpush1.msra.mxu0 0.0
        %994 = vmatprep.subr.mxu0 0.0
        %995 = vmatpush1.msra.mxu0 0.0
        %996 = vmatprep.subr.mxu0 0.0
        %997 = vmatpush1.msra.mxu0 0.0
        %998 = vmatprep.subr.mxu0 0.0
        %999 = vmatpush1.msra.mxu0 0.0
        %1000 = vmatprep.subr.mxu0 0.0
        %1001 = vmatpush1.msra.mxu0 0.0
        %1002 = vmatprep.subr.mxu0 0.0
        %1003 = vmatpush1.msra.mxu0 0.0
        %1004 = vmatprep.subr.mxu0 0.0
        %1005 = vmatpush1.msra.mxu0 0.0
        %1006 = vmatprep.subr.mxu0 0.0
        %1007 = vmatpush1.msra.mxu0 0.0
        %1008 = vmatprep.subr.mxu0 0.0
        %1009 = vmatpush1.msra.mxu0 0.0
        %1010 = vmatprep.subr.mxu0 0.0
        %1011 = vmatpush1.msra.mxu0 0.0
        %1012 = vmatprep.subr.mxu0 0.0
        %1013 = vmatpush1.msra.mxu0 %v980
        %1014 = vmatprep.subr.mxu0 0.0
        %1015 = vmatpush2.msra.mxu0 0.0
        %1016 = vmatprep.subr.mxu0 0.0
        %1017 = vmatpush2.msra.mxu0 0.0
        %1018 = vmatprep.subr.mxu0 0.0
        %1019 = vmatpush2.msra.mxu0 0.0
        %1020 = vmatprep.subr.mxu0 0.0
        %1021 = vmatpush2.msra.mxu0 0.0
        %1022 = vmatprep.subr.mxu0 0.0
        %1023 = vmatpush2.msra.mxu0 0.0
        %1024 = vmatprep.subr.mxu0 0.0
        %1025 = vmatpush2.msra.mxu0 0.0
        %1026 = vmatprep.subr.mxu0 0.0
        %1027 = vmatpush2.msra.mxu0 0.0
        %1028 = vmatprep.subr.mxu0 0.0
        %1029 = vmatpush2.msra.mxu0 0.0
        %1030 = vmatprep.subr.mxu0 0.0
        %1031 = vmatpush2.msra.mxu0 0.0
        %1032 = vmatprep.subr.mxu0 0.0
        %1033 = vmatpush2.msra.mxu0 0.0
        %1034 = vmatprep.subr.mxu0 0.0
        %1035 = vmatpush2.msra.mxu0 0.0
        %1036 = vmatprep.subr.mxu0 0.0
        %1037 = vmatpush2.msra.mxu0 0.0
        %1038 = vmatprep.subr.mxu0 0.0
        %1039 = vmatpush2.msra.mxu0 0.0
        %1040 = vmatprep.subr.mxu0 0.0
        %1041 = vmatpush2.msra.mxu0 0.0
        %1042 = vmatprep.subr.mxu0 0.0
        %1043 = vmatpush2.msra.mxu0 0.0
        %1044 = vmatprep.subr.mxu0 0.0
        %1045 = vmatpush2.msra.mxu0 0.0
        %1046 = vmatprep.mubr.f32.mxu0 0.0
        %1047 = vmatmul.mubr.f32.gmra.mxu0 %v881
        %v1048 = vpop.f32.mrf.mxu0
        %v1049 = vadd.f32 0.0, %v1048
        %v1050 = vpop.f32.mrf.mxu0
        %1051 = vdwg.mxu0
        %v1052 = vmul.f32 %v1049, %v877
        %1053 = vadd.xlane.f32.xlu0 %v1052
        %v1054 = vpop.xlane.xlu0 %1053
        %v1055 = vmul.f32 %v1054, %v475
        %1056 = vrot.lane.b32.xlu0 %v475, 2
        %v1057 = vpop.permute.xlu0 %1056
        %v1059 = vmul.f32 %v558, %v1057
        %1061 = vrot.lane.b32.xlu0 %v1059, 126
        %v1062 = vpop.permute.xlu0 %1061
        %v1064 = vsub.f32 %v1055, %v1062
        %v1065 = vand.u32 2147483647, %v1064
        %1067 = vrot.lane.b32.xlu0 %v1065, 127
        %v1068 = vpop.permute.xlu0 %1067
        %v1070 = vsel %vm563, %v1068, 0.0
        %1071 = vadd.xlane.f32.xlu0 %v1070
        %v1072 = vpop.xlane.xlu0 %1071
        %v1073 = vrot.slane %v1072, 4
        %v1074 = vadd.f32 %v1072, %v1073
        %v1075 = vrot.slane %v1074, 2
        %v1076 = vadd.f32 %v1074, %v1075
        %v1077 = vrot.slane %v1076, 1
        %v1078 = vadd.f32 %v1076, %v1077
        %s1079 = vtos %v1078
        %s1080 = sadd.f32 %s976, %s1079
        %s1081 = scalar_lea.vmem %s3, 4
        %v1082 = vld [vmem:[%s1081] sm:$0x3]
        %v1084 = vsel %vm481, %v1082, 0
        %1086 = vmatprep.subr.mxu0 0.0
        %1087 = vmatpush1.msra.mxu0 0.0
        %1088 = vmatprep.subr.mxu0 0.0
        %1089 = vmatpush1.msra.mxu0 0.0
        %1090 = vmatprep.subr.mxu0 0.0
        %1091 = vmatpush1.msra.mxu0 0.0
        %1092 = vmatprep.subr.mxu0 0.0
        %1093 = vmatpush1.msra.mxu0 0.0
        %1094 = vmatprep.subr.mxu0 0.0
        %1095 = vmatpush1.msra.mxu0 0.0
        %1096 = vmatprep.subr.mxu0 0.0
        %1097 = vmatpush1.msra.mxu0 0.0
        %1098 = vmatprep.subr.mxu0 0.0
        %1099 = vmatpush1.msra.mxu0 0.0
        %1100 = vmatprep.subr.mxu0 0.0
        %1101 = vmatpush1.msra.mxu0 0.0
        %1102 = vmatprep.subr.mxu0 0.0
        %1103 = vmatpush1.msra.mxu0 0.0
        %1104 = vmatprep.subr.mxu0 0.0
        %1105 = vmatpush1.msra.mxu0 0.0
        %1106 = vmatprep.subr.mxu0 0.0
        %1107 = vmatpush1.msra.mxu0 0.0
        %1108 = vmatprep.subr.mxu0 0.0
        %1109 = vmatpush1.msra.mxu0 0.0
        %1110 = vmatprep.subr.mxu0 0.0
        %1111 = vmatpush1.msra.mxu0 0.0
        %1112 = vmatprep.subr.mxu0 0.0
        %1113 = vmatpush1.msra.mxu0 0.0
        %1114 = vmatprep.subr.mxu0 0.0
        %1115 = vmatpush1.msra.mxu0 0.0
        %1116 = vmatprep.subr.mxu0 0.0
        %1117 = vmatpush1.msra.mxu0 %v1084
        %1118 = vmatprep.subr.mxu0 0.0
        %1119 = vmatpush2.msra.mxu0 0.0
        %1120 = vmatprep.subr.mxu0 0.0
        %1121 = vmatpush2.msra.mxu0 0.0
        %1122 = vmatprep.subr.mxu0 0.0
        %1123 = vmatpush2.msra.mxu0 0.0
        %1124 = vmatprep.subr.mxu0 0.0
        %1125 = vmatpush2.msra.mxu0 0.0
        %1126 = vmatprep.subr.mxu0 0.0
        %1127 = vmatpush2.msra.mxu0 0.0
        %1128 = vmatprep.subr.mxu0 0.0
        %1129 = vmatpush2.msra.mxu0 0.0
        %1130 = vmatprep.subr.mxu0 0.0
        %1131 = vmatpush2.msra.mxu0 0.0
        %1132 = vmatprep.subr.mxu0 0.0
        %1133 = vmatpush2.msra.mxu0 0.0
        %1134 = vmatprep.subr.mxu0 0.0
        %1135 = vmatpush2.msra.mxu0 0.0
        %1136 = vmatprep.subr.mxu0 0.0
        %1137 = vmatpush2.msra.mxu0 0.0
        %1138 = vmatprep.subr.mxu0 0.0
        %1139 = vmatpush2.msra.mxu0 0.0
        %1140 = vmatprep.subr.mxu0 0.0
        %1141 = vmatpush2.msra.mxu0 0.0
        %1142 = vmatprep.subr.mxu0 0.0
        %1143 = vmatpush2.msra.mxu0 0.0
        %1144 = vmatprep.subr.mxu0 0.0
        %1145 = vmatpush2.msra.mxu0 0.0
        %1146 = vmatprep.subr.mxu0 0.0
        %1147 = vmatpush2.msra.mxu0 0.0
        %1148 = vmatprep.subr.mxu0 0.0
        %1149 = vmatpush2.msra.mxu0 0.0
        %1150 = vmatprep.mubr.f32.mxu0 0.0
        %1151 = vmatmul.mubr.f32.gmra.mxu0 %v881
        %v1152 = vpop.f32.mrf.mxu0
        %v1153 = vadd.f32 0.0, %v1152
        %v1154 = vpop.f32.mrf.mxu0
        %1155 = vdwg.mxu0
        %v1156 = vmul.f32 %v1153, %v877
        %1157 = vadd.xlane.f32.xlu0 %v1156
        %v1158 = vpop.xlane.xlu0 %1157
        %v1159 = vmul.f32 %v1158, %v475
        %v1160 = vsub.f32 %v1159, %v851
        %v1161 = vand.u32 2147483647, %v1160
        %1163 = vrot.lane.b32.xlu0 %v1161, 127
        %v1164 = vpop.permute.xlu0 %1163
        %v1166 = vsel %vm563, %v1164, 0.0
        %1167 = vadd.xlane.f32.xlu0 %v1166
        %v1168 = vpop.xlane.xlu0 %1167
        %v1169 = vrot.slane %v1168, 4
        %v1170 = vadd.f32 %v1168, %v1169
        %v1171 = vrot.slane %v1170, 2
        %v1172 = vadd.f32 %v1170, %v1171
        %v1173 = vrot.slane %v1172, 1
        %v1174 = vadd.f32 %v1172, %v1173
        %s1175 = vtos %v1174
        %s1176 = sadd.f32 %s865, %s1175
        %s1177 = scalar_lea.vmem %s3, 6
        %v1178 = vld [vmem:[%s1177] sm:$0x3]
        %v1180 = vsel %vm481, %v1178, 0
        %1182 = vmatprep.subr.mxu0 0.0
        %1183 = vmatpush1.msra.mxu0 0.0
        %1184 = vmatprep.subr.mxu0 0.0
        %1185 = vmatpush1.msra.mxu0 0.0
        %1186 = vmatprep.subr.mxu0 0.0
        %1187 = vmatpush1.msra.mxu0 0.0
        %1188 = vmatprep.subr.mxu0 0.0
        %1189 = vmatpush1.msra.mxu0 0.0
        %1190 = vmatprep.subr.mxu0 0.0
        %1191 = vmatpush1.msra.mxu0 0.0
        %1192 = vmatprep.subr.mxu0 0.0
        %1193 = vmatpush1.msra.mxu0 0.0
        %1194 = vmatprep.subr.mxu0 0.0
        %1195 = vmatpush1.msra.mxu0 0.0
        %1196 = vmatprep.subr.mxu0 0.0
        %1197 = vmatpush1.msra.mxu0 0.0
        %1198 = vmatprep.subr.mxu0 0.0
        %1199 = vmatpush1.msra.mxu0 0.0
        %1200 = vmatprep.subr.mxu0 0.0
        %1201 = vmatpush1.msra.mxu0 0.0
        %1202 = vmatprep.subr.mxu0 0.0
        %1203 = vmatpush1.msra.mxu0 0.0
        %1204 = vmatprep.subr.mxu0 0.0
        %1205 = vmatpush1.msra.mxu0 0.0
        %1206 = vmatprep.subr.mxu0 0.0
        %1207 = vmatpush1.msra.mxu0 0.0
        %1208 = vmatprep.subr.mxu0 0.0
        %1209 = vmatpush1.msra.mxu0 0.0
        %1210 = vmatprep.subr.mxu0 0.0
        %1211 = vmatpush1.msra.mxu0 0.0
        %1212 = vmatprep.subr.mxu0 0.0
        %1213 = vmatpush1.msra.mxu0 %v1180
        %1214 = vmatprep.subr.mxu0 0.0
        %1215 = vmatpush2.msra.mxu0 0.0
        %1216 = vmatprep.subr.mxu0 0.0
        %1217 = vmatpush2.msra.mxu0 0.0
        %1218 = vmatprep.subr.mxu0 0.0
        %1219 = vmatpush2.msra.mxu0 0.0
        %1220 = vmatprep.subr.mxu0 0.0
        %1221 = vmatpush2.msra.mxu0 0.0
        %1222 = vmatprep.subr.mxu0 0.0
        %1223 = vmatpush2.msra.mxu0 0.0
        %1224 = vmatprep.subr.mxu0 0.0
        %1225 = vmatpush2.msra.mxu0 0.0
        %1226 = vmatprep.subr.mxu0 0.0
        %1227 = vmatpush2.msra.mxu0 0.0
        %1228 = vmatprep.subr.mxu0 0.0
        %1229 = vmatpush2.msra.mxu0 0.0
        %1230 = vmatprep.subr.mxu0 0.0
        %1231 = vmatpush2.msra.mxu0 0.0
        %1232 = vmatprep.subr.mxu0 0.0
        %1233 = vmatpush2.msra.mxu0 0.0
        %1234 = vmatprep.subr.mxu0 0.0
        %1235 = vmatpush2.msra.mxu0 0.0
        %1236 = vmatprep.subr.mxu0 0.0
        %1237 = vmatpush2.msra.mxu0 0.0
        %1238 = vmatprep.subr.mxu0 0.0
        %1239 = vmatpush2.msra.mxu0 0.0
        %1240 = vmatprep.subr.mxu0 0.0
        %1241 = vmatpush2.msra.mxu0 0.0
        %1242 = vmatprep.subr.mxu0 0.0
        %1243 = vmatpush2.msra.mxu0 0.0
        %1244 = vmatprep.subr.mxu0 0.0
        %1245 = vmatpush2.msra.mxu0 0.0
        %1246 = vmatprep.mubr.f32.mxu0 0.0
        %1247 = vmatmul.mubr.f32.gmra.mxu0 %v881
        %v1248 = vpop.f32.mrf.mxu0
        %v1249 = vadd.f32 0.0, %v1248
        %v1250 = vpop.f32.mrf.mxu0
        %1251 = vdwg.mxu0
        %v1252 = vmul.f32 %v1249, %v877
        %1253 = vadd.xlane.f32.xlu0 %v1252
        %v1254 = vpop.xlane.xlu0 %1253
        %v1255 = vmul.f32 %v1254, %v475
        %v1256 = vmul.f32 %v753, %v1057
        %1258 = vrot.lane.b32.xlu0 %v1256, 126
        %v1259 = vpop.permute.xlu0 %1258
        %v1261 = vsub.f32 %v1255, %v1259
        %v1262 = vand.u32 2147483647, %v1261
        %1264 = vrot.lane.b32.xlu0 %v1262, 127
        %v1265 = vpop.permute.xlu0 %1264
        %v1267 = vsel %vm563, %v1265, 0.0
        %1268 = vadd.xlane.f32.xlu0 %v1267
        %v1269 = vpop.xlane.xlu0 %1268
        %v1270 = vrot.slane %v1269, 4
        %v1271 = vadd.f32 %v1269, %v1270
        %v1272 = vrot.slane %v1271, 2
        %v1273 = vadd.f32 %v1271, %v1272
        %v1274 = vrot.slane %v1273, 1
        %v1275 = vadd.f32 %v1273, %v1274
        %s1276 = vtos %v1275
        %s1277 = sadd.f32 %s1176, %s1276
        %v1278 = vsel %vm477, %v475, 0.0
        %1279 = vadd.xlane.f32.xlu0 %v1278
        %v1280 = vpop.xlane.xlu0 %1279
        %v1281 = vrot.slane %v1280, 4
        %v1282 = vadd.f32 %v1280, %v1281
        %v1283 = vrot.slane %v1282, 2
        %v1284 = vadd.f32 %v1282, %v1283
        %v1285 = vrot.slane %v1284, 1
        %v1286 = vadd.f32 %v1284, %v1285
        %s1287 = vtos %v1286
        %vm1288 = vcmp.eq.s32.totalorder %v440, 3
        %vm1289 = vmand %vm443, %vm1288
        %v1290 = vstv %s1080
        %v1291 = vsel %vm1289, %v1290, 0.0
        %vm1292 = vcmp.eq.s32.totalorder %v440, 4
        %vm1293 = vmand %vm443, %vm1292
        %v1294 = vstv %s1277
        %v1295 = vsel %vm1293, %v1294, %v1291
        %vm1296 = vcmp.eq.s32.totalorder %v440, 5
        %vm1297 = vmand %vm443, %vm1296
        %v1298 = vstv %s1287
        %v1299 = vsel %vm1297, %v1298, %v1295
        %v1300 = vld [vmem:[%s350] sm:$0xff]
        %v1301 = vadd.f32 %v1300, %v1299
        %1302 = vst [vmem:[%s350] sm:$0xff] %v1301
      $region60: #{det_loss_pallas.1} parent=55 // pred_fallthru
        _
      %p1303 = scmp.lt.s32.totalorder %s20, 1
      %s1304 = scalar_select %p1303, %s20, 1
      %s1305 = smul.addr %s1304, 8
      %s1306 = scalar_lea.vmem %s9, %s1305
      // Predicated region
      $region61: #{det_loss_pallas.1} parent=55 // pred_check
        %p1307 = pneg %p237
      $region62: #{det_loss_pallas.1} parent=55 // pred_check_branch
        %1309 = sbr.rel (%p1307) target = $region64
      $region63: #{det_loss_pallas.1} parent=55 // pred_region
        _
      $region64: #{det_loss_pallas.1} parent=55 // pred_fallthru
        _
    $region56: #{det_loss_pallas.1} parent=5 // pred_fallthru
      _
    %p1310 = scmp.le.s32.totalorder 2, %s15
    // Predicated region
    $region65: #{det_loss_pallas.1} parent=5 // pred_check
      %p1311 = pneg %p1310
    $region66: #{det_loss_pallas.1} parent=5 // pred_check_branch
      %1313 = sbr.rel (%p1311) target = $region68
    $region67: #{det_loss_pallas.1} parent=5 // pred_region
      %s1314 = ssub.s32 %s15, 2
      // Predicated region
      $region69: #{det_loss_pallas.1} parent=67 // pred_check
        %p1315 = pneg %p243
      $region70: #{det_loss_pallas.1} parent=67 // pred_check_branch
        %1317 = sbr.rel (%p1315) target = $region72
      $region71: #{det_loss_pallas.1} parent=67 // pred_region
        %p1318 = scmp.lt.s32.totalorder %s21, 1
        %s1319 = scalar_select %p1318, %s21, 1
        %s1320 = smul.addr %s1319, 8
        %s1321 = scalar_lea.vmem %s9, %s1320
      $region72: #{det_loss_pallas.1} parent=67 // pred_fallthru
        _
    $region68: #{det_loss_pallas.1} parent=5 // pred_fallthru
      _
  $region6: #{det_loss_pallas.1} parent=0 // loop_footer
    %s19 = sadd.s32 1, %s15
  $region7: #{det_loss_pallas.1} parent=0 // loop_footer_branch
    %14 = sbr.rel target = $region3
  $region8: #{det_loss_pallas.1} parent=0 // loop_exit
    _

</llo_original>
